<compile_context>
chip_gen: v7x
topology: tpu7x:2x2x1
jax: 0.10.0
libtpu: 0.0.40
codegen_flags: <defaults>
</compile_context>

<pallas_src>
import functools

import jax
import jax.numpy as jnp
from jax.experimental import pallas as pl
from jax.experimental.pallas import tpu as pltpu


def _hardswish(x):
    # PyTorch nn.Hardswish: x * relu6(x + 3) / 6
    return x * jnp.clip(x + 3.0, 0.0, 6.0) * (1.0 / 6.0)


def _round_up(a, b):
    return (a + b - 1) // b * b


def _eb_kernel(x_ref, mask_ref, w1_ref, b1_ref, w2_ref, b2_ref, o_ref, patches_ref,
               *, K, Wpp, add):
    """One batch sample of the fused bottleneck.

    x_ref      : [1, C1, La]   zero-padded input, La = (H+2P+1)*Wpp             (bf16)
    mask_ref   : [1, La]       1.0 at true (non-padding) positions, else 0.0    (f32)
    w1_ref     : [Cm, C1]      cv1 weight, BN1 scale folded in                  (bf16)
    b1_ref     : [Cm, 1]       folded BN1 shift                                 (f32)
    w2_ref     : [C2, KKCpad]  cv2 weight, taps flattened, BN2 scale folded     (bf16)
    b2_ref     : [C2, 1]       folded BN2 shift                                 (f32)
    o_ref      : [1, C2, L]    padded-width output, L = H*Wpp (lane-dense)      (f32)
    patches_ref: [KKCpad, L]   VMEM scratch for the im2col matrix               (bf16)
    """
    P = K // 2
    Cm = w1_ref.shape[0]
    kkc = K * K * Cm
    kkc_pad, L = patches_ref.shape

    xwin = x_ref[0]                                               # [C1, La] bf16

    # ---- cv1: 1x1 conv (BN scale pre-folded) + bias + hardswish, zeroed at padding ----
    a1 = jnp.dot(w1_ref[...], xwin, preferred_element_type=jnp.float32)
    a1 = _hardswish(a1 + b1_ref[...]) * mask_ref[...]             # [Cm, La] f32

    # ---- im2col: K*K lane-shifted taps written into the patches scratch (static offsets) ----
    for t in range(K * K):
        dy, dx = divmod(t, K)
        off = dy * Wpp + dx
        patches_ref[t * Cm:(t + 1) * Cm, :] = a1[:, off:off + L].astype(jnp.bfloat16)
    if kkc_pad > kkc:                                             # zero the pad tail rows
        patches_ref[kkc:, :] = jnp.zeros((kkc_pad - kkc, L), jnp.bfloat16)

    # ---- cv2: KxK conv as ONE 128-deep MXU matmul + bias + hardswish ----
    a2 = jnp.dot(w2_ref[...], patches_ref[...],
                 preferred_element_type=jnp.float32)              # [C2, L] f32
    a2 = _hardswish(a2 + b2_ref[...])

    if add:  # shortcut (c1 == c2): single static lane-offset slice of the input window
        roff = P * Wpp + P
        a2 = a2 + xwin[:, roff:roff + L].astype(jnp.float32)

    o_ref[0] = a2                                                 # lane-dense unmasked store


def elastic_bottleneck_pallas(x_nchw, params, *, K, add):
    """Fused ElasticBottleneck forward.  x_nchw: [N, C1, H, W] float32 (NCHW)."""
    N, C1, H, W = x_nchw.shape
    P = K // 2
    Cm = params["w1f"].shape[0]
    C2, kkc_pad = params["w2f"].shape

    # Lane layout: spatial dims flattened onto the 128-lane axis with a small padded
    # width Wpp (multiple of 8) so every cv2 tap is a pure static lane shift.
    Wpp = _round_up(W + 2 * P, 8)
    extra = -(-2 * P // Wpp)          # extra bottom rows so all tap slices stay in-bounds
    Hp = H + 2 * P + extra
    La = Hp * Wpp
    L = H * Wpp

    # Per-step VMEM working set (double-buffered in/out blocks + patches scratch).
    vmem_est = 2 * (C1 * La * 2 + La * 4 + C2 * L * 4) + kkc_pad * L * 2
    # TODO(synk): for large images (vmem_est beyond ~16 MiB, v7x scoped-VMEM headroom)
    # add a row-blocked grid with an overlapping (TH+2P)-row window; unnecessary here.
    assert vmem_est < 16 * 1024 * 1024, vmem_est

    xb = x_nchw.astype(jnp.bfloat16)  # bf16 DMA: halves input HBM bytes
    xp = jnp.pad(xb, ((0, 0), (0, 0), (P, Hp - H - P), (P, Wpp - W - P)))
    xp = xp.reshape(N, C1, La)        # spatial-flattened, lane-dense

    # {0,1} validity mask over the padded spatial grid (trace-time constant, 2 KiB).
    rows = jnp.arange(Hp)[:, None]
    cols = jnp.arange(Wpp)[None, :]
    valid = (rows >= P) & (rows < P + H) & (cols >= P) & (cols < P + W)
    mask = valid.astype(jnp.float32).reshape(1, La)

    kern = functools.partial(_eb_kernel, K=K, Wpp=Wpp, add=add)
    out = pl.pallas_call(
        kern,
        out_shape=jax.ShapeDtypeStruct((N, C2, L), jnp.float32),
        grid=(N,),                    # one coarse step per sample (>=2 keeps v7x megacore fed)
        in_specs=[
            pl.BlockSpec((1, C1, La), lambda n: (n, 0, 0)),
            pl.BlockSpec((1, La), lambda n: (0, 0)),
            pl.BlockSpec((Cm, C1), lambda n: (0, 0)),
            pl.BlockSpec((Cm, 1), lambda n: (0, 0)),
            pl.BlockSpec((C2, kkc_pad), lambda n: (0, 0)),
            pl.BlockSpec((C2, 1), lambda n: (0, 0)),
        ],
        out_specs=pl.BlockSpec((1, C2, L), lambda n: (n, 0, 0)),
        scratch_shapes=[pltpu.VMEM((kkc_pad, L), jnp.bfloat16)],
        compiler_params=pltpu.CompilerParams(dimension_semantics=("parallel",)),
    )(xp, mask, params["w1f"], params["b1"], params["w2f"], params["b2"])

    # strip the (Wpp - W) padded columns of each row (cheap wrapper slice)
    return out.reshape(N, C2, H, Wpp)[:, :, :, :W]


def make_params(key, c1, c2, k_list=(3, 5), e_list=(0.3, 0.5, 0.7)):
    """Synthetic weights with the shapes implied by __init__, BN folded + bf16 MXU copies."""
    kmax = max(k_list)
    cm = int(c2 * max(e_list))                    # max_mid_channel (int() truncation, as in torch)
    eps = 1e-5
    ks = jax.random.split(key, 8)

    w1 = jax.random.normal(ks[0], (cm, c1), jnp.float32) * 0.2              # cv1 weight [:, :, 0, 0]
    w2 = jax.random.normal(ks[1], (c2, cm, kmax, kmax), jnp.float32) * 0.1  # cv2 weight (OIHW)

    g1 = 1.0 + 0.1 * jax.random.normal(ks[2], (cm,), jnp.float32)
    be1 = 0.1 * jax.random.normal(ks[3], (cm,), jnp.float32)
    m1 = 0.1 * jax.random.normal(ks[4], (cm,), jnp.float32)
    v1 = 0.5 + 0.2 * jnp.abs(jax.random.normal(ks[5], (cm,), jnp.float32))
    g2 = 1.0 + 0.1 * jax.random.normal(ks[6], (c2,), jnp.float32)
    be2 = 0.1 * jax.random.normal(ks[7], (c2,), jnp.float32)
    m2 = jnp.zeros((c2,), jnp.float32)
    v2 = jnp.ones((c2,), jnp.float32)

    s1 = g1 / jnp.sqrt(v1 + eps); b1 = be1 - m1 * s1
    s2 = g2 / jnp.sqrt(v2 + eps); b2 = be2 - m2 * s2

    # fold BN scales into the conv weights; bf16 copies for the MXU
    w1f = (w1 * s1[:, None]).astype(jnp.bfloat16)                           # [cm, c1]
    w2t = jnp.transpose(w2, (0, 2, 3, 1)).reshape(c2, kmax * kmax * cm)     # [o, (dy*K+dx)*cm + c]
    w2f = (w2t * s2[:, None]).astype(jnp.bfloat16)
    kkc_pad = _round_up(kmax * kmax * cm, 128)
    if kkc_pad > kmax * kmax * cm:
        w2f = jnp.concatenate(
            [w2f, jnp.zeros((c2, kkc_pad - kmax * kmax * cm), jnp.bfloat16)], axis=1)

    return {"w1f": w1f, "b1": b1.reshape(cm, 1),
            "w2f": w2f, "b2": b2.reshape(c2, 1)}, kmax


def reference(x, params, K, add):
    """Pure-JAX reference of the same forward pass (same folded/bf16 weights & casts)."""
    P = K // 2
    N, C1, H, W = x.shape
    w1f = params["w1f"].astype(jnp.float32)                  # [Cm, C1] (bf16 values)
    Cm = w1f.shape[0]
    C2 = params["w2f"].shape[0]
    w2f = params["w2f"][:, :K * K * Cm].astype(jnp.float32)  # [C2, K*K*Cm]
    b1 = params["b1"].reshape(1, Cm, 1, 1)
    b2 = params["b2"].reshape(1, C2, 1, 1)

    xb = x.astype(jnp.bfloat16).astype(jnp.float32)          # mirror the kernel's bf16 input DMA
    a1 = jnp.einsum("mc,nchw->nmhw", w1f, xb,
                    precision=jax.lax.Precision.HIGHEST) + b1
    a1 = _hardswish(a1)
    a1b = a1.astype(jnp.bfloat16).astype(jnp.float32)        # mirror bf16 patches
    a1p = jnp.pad(a1b, ((0, 0), (0, 0), (P, P), (P, P)))
    w2r = w2f.reshape(C2, K, K, Cm)
    a2 = jnp.zeros((N, C2, H, W), jnp.float32)
    for dy in range(K):
        for dx in range(K):
            a2 = a2 + jnp.einsum("oc,nchw->nohw", w2r[:, dy, dx, :],
                                 a1p[:, :, dy:dy + H, dx:dx + W],
                                 precision=jax.lax.Precision.HIGHEST)
    a2 = _hardswish(a2 + b2)
    return xb + a2 if add else a2


if __name__ == "__main__":
    key = jax.random.PRNGKey(0)
    kp, kx = jax.random.split(key)

    c1 = c2 = 8                                   # shortcut active since c1 == c2
    params, K = make_params(kp, c1, c2)
    x = jax.random.normal(kx, (2, c1, 16, 16), jnp.float32)   # NCHW like PyTorch
    add = True

    y = jax.block_until_ready(elastic_bottleneck_pallas(x, params, K=K, add=add))
    y_ref = reference(x, params, K, add)

    assert y.shape == x.shape
    err = float(jnp.max(jnp.abs(y - y_ref)))
    # bf16 MXU operands + bf16 input/residual (kernel & reference round at the same points,
    # but with slightly different f32 accumulation orders) -> 2e-2 absolute budget;
    # structural bugs would be O(0.1+).
    assert err < 2e-2, err
    print("KERNEL_OK")
</pallas_src>

<mosaic_0001>
module attributes {stable_mosaic.version = 11 : i64} {
  func.func @_eb_kernel(%arg0: i32, %arg1: memref<1x8x504xbf16, #tpu.memory_space<vmem>>, %arg2: memref<1x504xf32, #tpu.memory_space<vmem>>, %arg3: memref<5x8xbf16, #tpu.memory_space<vmem>>, %arg4: memref<5x1xf32, #tpu.memory_space<vmem>>, %arg5: memref<8x128xbf16, #tpu.memory_space<vmem>>, %arg6: memref<8x1xf32, #tpu.memory_space<vmem>>, %arg7: memref<1x8x384xf32, #tpu.memory_space<vmem>>, %arg8: memref<128x384xbf16, #tpu.memory_space<vmem>>) attributes {dimension_semantics = [#tpu.dimension_semantics<parallel>], iteration_bounds = array<i64: 2>, scalar_prefetch = 0 : i64, scratch_operands = 1 : i64, tpu.core_type = #tpu.core_type<tc>, window_params = [{transform_indices = @transform_0, window_bounds = array<i64: 1, 8, 504>}, {pipeline_mode = #tpu.pipeline_mode<synchronous>, transform_indices = @transform_1, window_bounds = array<i64: 1, 504>}, {pipeline_mode = #tpu.pipeline_mode<synchronous>, transform_indices = @transform_2, window_bounds = array<i64: 5, 8>}, {pipeline_mode = #tpu.pipeline_mode<synchronous>, transform_indices = @transform_3, window_bounds = array<i64: 5, 1>}, {pipeline_mode = #tpu.pipeline_mode<synchronous>, transform_indices = @transform_4, window_bounds = array<i64: 8, 128>}, {pipeline_mode = #tpu.pipeline_mode<synchronous>, transform_indices = @transform_5, window_bounds = array<i64: 8, 1>}, {transform_indices = @transform_6, window_bounds = array<i64: 1, 8, 384>}]} {
    %c0 = arith.constant 0 : index
    %c0_0 = arith.constant 0 : index
    %c0_1 = arith.constant 0 : index
    %0 = vector.load %arg1[%c0, %c0_0, %c0_1] : memref<1x8x504xbf16, #tpu.memory_space<vmem>>, vector<1x8x504xbf16>
    %1 = vector.shape_cast %0 : vector<1x8x504xbf16> to vector<8x504xbf16>
    %c0_2 = arith.constant 0 : index
    %c0_3 = arith.constant 0 : index
    %2 = vector.load %arg3[%c0_2, %c0_3] : memref<5x8xbf16, #tpu.memory_space<vmem>>, vector<5x8xbf16>
    %cst = arith.constant dense<0.000000e+00> : vector<5x504xf32>
    %3 = tpu.matmul %2, %1, %cst {dimension_numbers = #tpu.dot_dimension_numbers<[1], [0], [0], [1], [0, 0, 1, 1], [], []>} : vector<5x8xbf16>, vector<8x504xbf16>, vector<5x504xf32> -> vector<5x504xf32>
    %c0_4 = arith.constant 0 : index
    %c0_5 = arith.constant 0 : index
    %4 = vector.load %arg4[%c0_4, %c0_5] : memref<5x1xf32, #tpu.memory_space<vmem>>, vector<5x1xf32>
    %5 = vector.broadcast %4 : vector<5x1xf32> to vector<5x504xf32>
    %6 = arith.addf %3, %5 : vector<5x504xf32>
    %cst_6 = arith.constant 3.000000e+00 : f32
    %7 = vector.broadcast %cst_6 : f32 to vector<5x504xf32>
    %8 = arith.addf %6, %7 : vector<5x504xf32>
    %cst_7 = arith.constant 0.000000e+00 : f32
    %cst_8 = arith.constant 6.000000e+00 : f32
    %9 = vector.broadcast %cst_7 : f32 to vector<5x504xf32>
    %10 = arith.maximumf %9, %8 : vector<5x504xf32>
    %11 = vector.broadcast %cst_8 : f32 to vector<5x504xf32>
    %12 = arith.minimumf %11, %10 : vector<5x504xf32>
    %13 = arith.mulf %6, %12 : vector<5x504xf32>
    %cst_9 = arith.constant 0.166666672 : f32
    %14 = vector.broadcast %cst_9 : f32 to vector<5x504xf32>
    %15 = arith.mulf %13, %14 : vector<5x504xf32>
    %c0_10 = arith.constant 0 : index
    %c0_11 = arith.constant 0 : index
    %16 = vector.load %arg2[%c0_10, %c0_11] : memref<1x504xf32, #tpu.memory_space<vmem>>, vector<1x504xf32>
    %17 = vector.broadcast %16 : vector<1x504xf32> to vector<5x504xf32>
    %18 = arith.mulf %15, %17 : vector<5x504xf32>
    %19 = vector.extract_strided_slice %18 {offsets = [0, 0], sizes = [5, 384], strides = [1, 1]} : vector<5x504xf32> to vector<5x384xf32>
    %20 = arith.truncf %19 : vector<5x384xf32> to vector<5x384xbf16>
    %c0_12 = arith.constant 0 : index
    %c0_13 = arith.constant 0 : index
    %21 = vector.load %arg8[%c0_12, %c0_13] : memref<128x384xbf16, #tpu.memory_space<vmem>>, vector<5x384xbf16>
    tpu.vector_store %arg8[%c0_12, %c0_13], %20 {strides = array<i32>} : memref<128x384xbf16, #tpu.memory_space<vmem>>, vector<5x384xbf16>,
    %22 = vector.extract_strided_slice %18 {offsets = [0, 1], sizes = [5, 384], strides = [1, 1]} : vector<5x504xf32> to vector<5x384xf32>
    %23 = arith.truncf %22 : vector<5x384xf32> to vector<5x384xbf16>
    %c5 = arith.constant 5 : index
    %c0_14 = arith.constant 0 : index
    %24 = vector.load %arg8[%c5, %c0_14] : memref<128x384xbf16, #tpu.memory_space<vmem>>, vector<5x384xbf16>
    tpu.vector_store %arg8[%c5, %c0_14], %23 {strides = array<i32>} : memref<128x384xbf16, #tpu.memory_space<vmem>>, vector<5x384xbf16>,
    %25 = vector.extract_strided_slice %18 {offsets = [0, 2], sizes = [5, 384], strides = [1, 1]} : vector<5x504xf32> to vector<5x384xf32>
    %26 = arith.truncf %25 : vector<5x384xf32> to vector<5x384xbf16>
    %c10 = arith.constant 10 : index
    %c0_15 = arith.constant 0 : index
    %27 = vector.load %arg8[%c10, %c0_15] : memref<128x384xbf16, #tpu.memory_space<vmem>>, vector<5x384xbf16>
    tpu.vector_store %arg8[%c10, %c0_15], %26 {strides = array<i32>} : memref<128x384xbf16, #tpu.memory_space<vmem>>, vector<5x384xbf16>,
    %28 = vector.extract_strided_slice %18 {offsets = [0, 3], sizes = [5, 384], strides = [1, 1]} : vector<5x504xf32> to vector<5x384xf32>
    %29 = arith.truncf %28 : vector<5x384xf32> to vector<5x384xbf16>
    %c15 = arith.constant 15 : index
    %c0_16 = arith.constant 0 : index
    %30 = vector.load %arg8[%c15, %c0_16] : memref<128x384xbf16, #tpu.memory_space<vmem>>, vector<5x384xbf16>
    tpu.vector_store %arg8[%c15, %c0_16], %29 {strides = array<i32>} : memref<128x384xbf16, #tpu.memory_space<vmem>>, vector<5x384xbf16>,
    %31 = vector.extract_strided_slice %18 {offsets = [0, 4], sizes = [5, 384], strides = [1, 1]} : vector<5x504xf32> to vector<5x384xf32>
    %32 = arith.truncf %31 : vector<5x384xf32> to vector<5x384xbf16>
    %c20 = arith.constant 20 : index
    %c0_17 = arith.constant 0 : index
    %33 = vector.load %arg8[%c20, %c0_17] : memref<128x384xbf16, #tpu.memory_space<vmem>>, vector<5x384xbf16>
    tpu.vector_store %arg8[%c20, %c0_17], %32 {strides = array<i32>} : memref<128x384xbf16, #tpu.memory_space<vmem>>, vector<5x384xbf16>,
    %34 = vector.extract_strided_slice %18 {offsets = [0, 24], sizes = [5, 384], strides = [1, 1]} : vector<5x504xf32> to vector<5x384xf32>
    %35 = arith.truncf %34 : vector<5x384xf32> to vector<5x384xbf16>
    %c25 = arith.constant 25 : index
    %c0_18 = arith.constant 0 : index
    %36 = vector.load %arg8[%c25, %c0_18] : memref<128x384xbf16, #tpu.memory_space<vmem>>, vector<5x384xbf16>
    tpu.vector_store %arg8[%c25, %c0_18], %35 {strides = array<i32>} : memref<128x384xbf16, #tpu.memory_space<vmem>>, vector<5x384xbf16>,
    %37 = vector.extract_strided_slice %18 {offsets = [0, 25], sizes = [5, 384], strides = [1, 1]} : vector<5x504xf32> to vector<5x384xf32>
    %38 = arith.truncf %37 : vector<5x384xf32> to vector<5x384xbf16>
    %c30 = arith.constant 30 : index
    %c0_19 = arith.constant 0 : index
    %39 = vector.load %arg8[%c30, %c0_19] : memref<128x384xbf16, #tpu.memory_space<vmem>>, vector<5x384xbf16>
    tpu.vector_store %arg8[%c30, %c0_19], %38 {strides = array<i32>} : memref<128x384xbf16, #tpu.memory_space<vmem>>, vector<5x384xbf16>,
    %40 = vector.extract_strided_slice %18 {offsets = [0, 26], sizes = [5, 384], strides = [1, 1]} : vector<5x504xf32> to vector<5x384xf32>
    %41 = arith.truncf %40 : vector<5x384xf32> to vector<5x384xbf16>
    %c35 = arith.constant 35 : index
    %c0_20 = arith.constant 0 : index
    %42 = vector.load %arg8[%c35, %c0_20] : memref<128x384xbf16, #tpu.memory_space<vmem>>, vector<5x384xbf16>
    tpu.vector_store %arg8[%c35, %c0_20], %41 {strides = array<i32>} : memref<128x384xbf16, #tpu.memory_space<vmem>>, vector<5x384xbf16>,
    %43 = vector.extract_strided_slice %18 {offsets = [0, 27], sizes = [5, 384], strides = [1, 1]} : vector<5x504xf32> to vector<5x384xf32>
    %44 = arith.truncf %43 : vector<5x384xf32> to vector<5x384xbf16>
    %c40 = arith.constant 40 : index
    %c0_21 = arith.constant 0 : index
    %45 = vector.load %arg8[%c40, %c0_21] : memref<128x384xbf16, #tpu.memory_space<vmem>>, vector<5x384xbf16>
    tpu.vector_store %arg8[%c40, %c0_21], %44 {strides = array<i32>} : memref<128x384xbf16, #tpu.memory_space<vmem>>, vector<5x384xbf16>,
    %46 = vector.extract_strided_slice %18 {offsets = [0, 28], sizes = [5, 384], strides = [1, 1]} : vector<5x504xf32> to vector<5x384xf32>
    %47 = arith.truncf %46 : vector<5x384xf32> to vector<5x384xbf16>
    %c45 = arith.constant 45 : index
    %c0_22 = arith.constant 0 : index
    %48 = vector.load %arg8[%c45, %c0_22] : memref<128x384xbf16, #tpu.memory_space<vmem>>, vector<5x384xbf16>
    tpu.vector_store %arg8[%c45, %c0_22], %47 {strides = array<i32>} : memref<128x384xbf16, #tpu.memory_space<vmem>>, vector<5x384xbf16>,
    %49 = vector.extract_strided_slice %18 {offsets = [0, 48], sizes = [5, 384], strides = [1, 1]} : vector<5x504xf32> to vector<5x384xf32>
    %50 = arith.truncf %49 : vector<5x384xf32> to vector<5x384xbf16>
    %c50 = arith.constant 50 : index
    %c0_23 = arith.constant 0 : index
    %51 = vector.load %arg8[%c50, %c0_23] : memref<128x384xbf16, #tpu.memory_space<vmem>>, vector<5x384xbf16>
    tpu.vector_store %arg8[%c50, %c0_23], %50 {strides = array<i32>} : memref<128x384xbf16, #tpu.memory_space<vmem>>, vector<5x384xbf16>,
    %52 = vector.extract_strided_slice %18 {offsets = [0, 49], sizes = [5, 384], strides = [1, 1]} : vector<5x504xf32> to vector<5x384xf32>
    %53 = arith.truncf %52 : vector<5x384xf32> to vector<5x384xbf16>
    %c55 = arith.constant 55 : index
    %c0_24 = arith.constant 0 : index
    %54 = vector.load %arg8[%c55, %c0_24] : memref<128x384xbf16, #tpu.memory_space<vmem>>, vector<5x384xbf16>
    tpu.vector_store %arg8[%c55, %c0_24], %53 {strides = array<i32>} : memref<128x384xbf16, #tpu.memory_space<vmem>>, vector<5x384xbf16>,
    %55 = vector.extract_strided_slice %18 {offsets = [0, 50], sizes = [5, 384], strides = [1, 1]} : vector<5x504xf32> to vector<5x384xf32>
    %56 = arith.truncf %55 : vector<5x384xf32> to vector<5x384xbf16>
    %c60 = arith.constant 60 : index
    %c0_25 = arith.constant 0 : index
    %57 = vector.load %arg8[%c60, %c0_25] : memref<128x384xbf16, #tpu.memory_space<vmem>>, vector<5x384xbf16>
    tpu.vector_store %arg8[%c60, %c0_25], %56 {strides = array<i32>} : memref<128x384xbf16, #tpu.memory_space<vmem>>, vector<5x384xbf16>,
    %58 = vector.extract_strided_slice %18 {offsets = [0, 51], sizes = [5, 384], strides = [1, 1]} : vector<5x504xf32> to vector<5x384xf32>
    %59 = arith.truncf %58 : vector<5x384xf32> to vector<5x384xbf16>
    %c65 = arith.constant 65 : index
    %c0_26 = arith.constant 0 : index
    %60 = vector.load %arg8[%c65, %c0_26] : memref<128x384xbf16, #tpu.memory_space<vmem>>, vector<5x384xbf16>
    tpu.vector_store %arg8[%c65, %c0_26], %59 {strides = array<i32>} : memref<128x384xbf16, #tpu.memory_space<vmem>>, vector<5x384xbf16>,
    %61 = vector.extract_strided_slice %18 {offsets = [0, 52], sizes = [5, 384], strides = [1, 1]} : vector<5x504xf32> to vector<5x384xf32>
    %62 = arith.truncf %61 : vector<5x384xf32> to vector<5x384xbf16>
    %c70 = arith.constant 70 : index
    %c0_27 = arith.constant 0 : index
    %63 = vector.load %arg8[%c70, %c0_27] : memref<128x384xbf16, #tpu.memory_space<vmem>>, vector<5x384xbf16>
    tpu.vector_store %arg8[%c70, %c0_27], %62 {strides = array<i32>} : memref<128x384xbf16, #tpu.memory_space<vmem>>, vector<5x384xbf16>,
    %64 = vector.extract_strided_slice %18 {offsets = [0, 72], sizes = [5, 384], strides = [1, 1]} : vector<5x504xf32> to vector<5x384xf32>
    %65 = arith.truncf %64 : vector<5x384xf32> to vector<5x384xbf16>
    %c75 = arith.constant 75 : index
    %c0_28 = arith.constant 0 : index
    %66 = vector.load %arg8[%c75, %c0_28] : memref<128x384xbf16, #tpu.memory_space<vmem>>, vector<5x384xbf16>
    tpu.vector_store %arg8[%c75, %c0_28], %65 {strides = array<i32>} : memref<128x384xbf16, #tpu.memory_space<vmem>>, vector<5x384xbf16>,
    %67 = vector.extract_strided_slice %18 {offsets = [0, 73], sizes = [5, 384], strides = [1, 1]} : vector<5x504xf32> to vector<5x384xf32>
    %68 = arith.truncf %67 : vector<5x384xf32> to vector<5x384xbf16>
    %c80 = arith.constant 80 : index
    %c0_29 = arith.constant 0 : index
    %69 = vector.load %arg8[%c80, %c0_29] : memref<128x384xbf16, #tpu.memory_space<vmem>>, vector<5x384xbf16>
    tpu.vector_store %arg8[%c80, %c0_29], %68 {strides = array<i32>} : memref<128x384xbf16, #tpu.memory_space<vmem>>, vector<5x384xbf16>,
    %70 = vector.extract_strided_slice %18 {offsets = [0, 74], sizes = [5, 384], strides = [1, 1]} : vector<5x504xf32> to vector<5x384xf32>
    %71 = arith.truncf %70 : vector<5x384xf32> to vector<5x384xbf16>
    %c85 = arith.constant 85 : index
    %c0_30 = arith.constant 0 : index
    %72 = vector.load %arg8[%c85, %c0_30] : memref<128x384xbf16, #tpu.memory_space<vmem>>, vector<5x384xbf16>
    tpu.vector_store %arg8[%c85, %c0_30], %71 {strides = array<i32>} : memref<128x384xbf16, #tpu.memory_space<vmem>>, vector<5x384xbf16>,
    %73 = vector.extract_strided_slice %18 {offsets = [0, 75], sizes = [5, 384], strides = [1, 1]} : vector<5x504xf32> to vector<5x384xf32>
    %74 = arith.truncf %73 : vector<5x384xf32> to vector<5x384xbf16>
    %c90 = arith.constant 90 : index
    %c0_31 = arith.constant 0 : index
    %75 = vector.load %arg8[%c90, %c0_31] : memref<128x384xbf16, #tpu.memory_space<vmem>>, vector<5x384xbf16>
    tpu.vector_store %arg8[%c90, %c0_31], %74 {strides = array<i32>} : memref<128x384xbf16, #tpu.memory_space<vmem>>, vector<5x384xbf16>,
    %76 = vector.extract_strided_slice %18 {offsets = [0, 76], sizes = [5, 384], strides = [1, 1]} : vector<5x504xf32> to vector<5x384xf32>
    %77 = arith.truncf %76 : vector<5x384xf32> to vector<5x384xbf16>
    %c95 = arith.constant 95 : index
    %c0_32 = arith.constant 0 : index
    %78 = vector.load %arg8[%c95, %c0_32] : memref<128x384xbf16, #tpu.memory_space<vmem>>, vector<5x384xbf16>
    tpu.vector_store %arg8[%c95, %c0_32], %77 {strides = array<i32>} : memref<128x384xbf16, #tpu.memory_space<vmem>>, vector<5x384xbf16>,
    %79 = vector.extract_strided_slice %18 {offsets = [0, 96], sizes = [5, 384], strides = [1, 1]} : vector<5x504xf32> to vector<5x384xf32>
    %80 = arith.truncf %79 : vector<5x384xf32> to vector<5x384xbf16>
    %c100 = arith.constant 100 : index
    %c0_33 = arith.constant 0 : index
    %81 = vector.load %arg8[%c100, %c0_33] : memref<128x384xbf16, #tpu.memory_space<vmem>>, vector<5x384xbf16>
    tpu.vector_store %arg8[%c100, %c0_33], %80 {strides = array<i32>} : memref<128x384xbf16, #tpu.memory_space<vmem>>, vector<5x384xbf16>,
    %82 = vector.extract_strided_slice %18 {offsets = [0, 97], sizes = [5, 384], strides = [1, 1]} : vector<5x504xf32> to vector<5x384xf32>
    %83 = arith.truncf %82 : vector<5x384xf32> to vector<5x384xbf16>
    %c105 = arith.constant 105 : index
    %c0_34 = arith.constant 0 : index
    %84 = vector.load %arg8[%c105, %c0_34] : memref<128x384xbf16, #tpu.memory_space<vmem>>, vector<5x384xbf16>
    tpu.vector_store %arg8[%c105, %c0_34], %83 {strides = array<i32>} : memref<128x384xbf16, #tpu.memory_space<vmem>>, vector<5x384xbf16>,
    %85 = vector.extract_strided_slice %18 {offsets = [0, 98], sizes = [5, 384], strides = [1, 1]} : vector<5x504xf32> to vector<5x384xf32>
    %86 = arith.truncf %85 : vector<5x384xf32> to vector<5x384xbf16>
    %c110 = arith.constant 110 : index
    %c0_35 = arith.constant 0 : index
    %87 = vector.load %arg8[%c110, %c0_35] : memref<128x384xbf16, #tpu.memory_space<vmem>>, vector<5x384xbf16>
    tpu.vector_store %arg8[%c110, %c0_35], %86 {strides = array<i32>} : memref<128x384xbf16, #tpu.memory_space<vmem>>, vector<5x384xbf16>,
    %88 = vector.extract_strided_slice %18 {offsets = [0, 99], sizes = [5, 384], strides = [1, 1]} : vector<5x504xf32> to vector<5x384xf32>
    %89 = arith.truncf %88 : vector<5x384xf32> to vector<5x384xbf16>
    %c115 = arith.constant 115 : index
    %c0_36 = arith.constant 0 : index
    %90 = vector.load %arg8[%c115, %c0_36] : memref<128x384xbf16, #tpu.memory_space<vmem>>, vector<5x384xbf16>
    tpu.vector_store %arg8[%c115, %c0_36], %89 {strides = array<i32>} : memref<128x384xbf16, #tpu.memory_space<vmem>>, vector<5x384xbf16>,
    %91 = vector.extract_strided_slice %18 {offsets = [0, 100], sizes = [5, 384], strides = [1, 1]} : vector<5x504xf32> to vector<5x384xf32>
    %92 = arith.truncf %91 : vector<5x384xf32> to vector<5x384xbf16>
    %c120 = arith.constant 120 : index
    %c0_37 = arith.constant 0 : index
    %93 = vector.load %arg8[%c120, %c0_37] : memref<128x384xbf16, #tpu.memory_space<vmem>>, vector<5x384xbf16>
    tpu.vector_store %arg8[%c120, %c0_37], %92 {strides = array<i32>} : memref<128x384xbf16, #tpu.memory_space<vmem>>, vector<5x384xbf16>,
    %cst_38 = arith.constant 0.000000e+00 : bf16
    %94 = vector.broadcast %cst_38 : bf16 to vector<3x384xbf16>
    %c125 = arith.constant 125 : index
    %c0_39 = arith.constant 0 : index
    %95 = vector.load %arg8[%c125, %c0_39] : memref<128x384xbf16, #tpu.memory_space<vmem>>, vector<3x384xbf16>
    tpu.vector_store %arg8[%c125, %c0_39], %94 {strides = array<i32>} : memref<128x384xbf16, #tpu.memory_space<vmem>>, vector<3x384xbf16>,
    %c0_40 = arith.constant 0 : index
    %c0_41 = arith.constant 0 : index
    %96 = vector.load %arg5[%c0_40, %c0_41] : memref<8x128xbf16, #tpu.memory_space<vmem>>, vector<8x128xbf16>
    %c0_42 = arith.constant 0 : index
    %c0_43 = arith.constant 0 : index
    %97 = vector.load %arg8[%c0_42, %c0_43] : memref<128x384xbf16, #tpu.memory_space<vmem>>, vector<128x384xbf16>
    %cst_44 = arith.constant dense<0.000000e+00> : vector<8x384xf32>
    %98 = tpu.matmul %96, %97, %cst_44 {dimension_numbers = #tpu.dot_dimension_numbers<[1], [0], [0], [1], [0, 0, 1, 1], [], []>} : vector<8x128xbf16>, vector<128x384xbf16>, vector<8x384xf32> -> vector<8x384xf32>
    %c0_45 = arith.constant 0 : index
    %c0_46 = arith.constant 0 : index
    %99 = vector.load %arg6[%c0_45, %c0_46] : memref<8x1xf32, #tpu.memory_space<vmem>>, vector<8x1xf32>
    %100 = vector.broadcast %99 : vector<8x1xf32> to vector<8x384xf32>
    %101 = arith.addf %98, %100 : vector<8x384xf32>
    %cst_47 = arith.constant 3.000000e+00 : f32
    %102 = vector.broadcast %cst_47 : f32 to vector<8x384xf32>
    %103 = arith.addf %101, %102 : vector<8x384xf32>
    %cst_48 = arith.constant 0.000000e+00 : f32
    %cst_49 = arith.constant 6.000000e+00 : f32
    %104 = vector.broadcast %cst_48 : f32 to vector<8x384xf32>
    %105 = arith.maximumf %104, %103 : vector<8x384xf32>
    %106 = vector.broadcast %cst_49 : f32 to vector<8x384xf32>
    %107 = arith.minimumf %106, %105 : vector<8x384xf32>
    %108 = arith.mulf %101, %107 : vector<8x384xf32>
    %cst_50 = arith.constant 0.166666672 : f32
    %109 = vector.broadcast %cst_50 : f32 to vector<8x384xf32>
    %110 = arith.mulf %108, %109 : vector<8x384xf32>
    %111 = vector.extract_strided_slice %1 {offsets = [0, 50], sizes = [8, 384], strides = [1, 1]} : vector<8x504xbf16> to vector<8x384xbf16>
    %112 = arith.extf %111 : vector<8x384xbf16> to vector<8x384xf32>
    %113 = arith.addf %110, %112 : vector<8x384xf32>
    %c0_51 = arith.constant 0 : index
    %c0_52 = arith.constant 0 : index
    %c0_53 = arith.constant 0 : index
    %114 = vector.load %arg7[%c0_51, %c0_52, %c0_53] : memref<1x8x384xf32, #tpu.memory_space<vmem>>, vector<1x8x384xf32>
    %115 = vector.shape_cast %114 : vector<1x8x384xf32> to vector<8x384xf32>
    %116 = vector.shape_cast %113 : vector<8x384xf32> to vector<1x8x384xf32>
    tpu.vector_store %arg7[%c0_51, %c0_52, %c0_53], %116 {strides = array<i32>} : memref<1x8x384xf32, #tpu.memory_space<vmem>>, vector<1x8x384xf32>,
    return
  }
  func.func @transform_0(%arg0: i32) -> (i32, i32, i32) {
    %c0_i32 = arith.constant 0 : i32
    %c0_i32_0 = arith.constant 0 : i32
    %c0_i32_1 = arith.constant 0 : i32
    return %arg0, %c0_i32, %c0_i32_0 : i32, i32, i32
  }
  func.func @transform_1(%arg0: i32) -> (i32, i32) {
    %c0_i32 = arith.constant 0 : i32
    %c0_i32_0 = arith.constant 0 : i32
    %c0_i32_1 = arith.constant 0 : i32
    return %c0_i32, %c0_i32_0 : i32, i32
  }
  func.func @transform_2(%arg0: i32) -> (i32, i32) {
    %c0_i32 = arith.constant 0 : i32
    %c0_i32_0 = arith.constant 0 : i32
    %c0_i32_1 = arith.constant 0 : i32
    return %c0_i32, %c0_i32_0 : i32, i32
  }
  func.func @transform_3(%arg0: i32) -> (i32, i32) {
    %c0_i32 = arith.constant 0 : i32
    %c0_i32_0 = arith.constant 0 : i32
    %c0_i32_1 = arith.constant 0 : i32
    return %c0_i32, %c0_i32_0 : i32, i32
  }
  func.func @transform_4(%arg0: i32) -> (i32, i32) {
    %c0_i32 = arith.constant 0 : i32
    %c0_i32_0 = arith.constant 0 : i32
    %c0_i32_1 = arith.constant 0 : i32
    return %c0_i32, %c0_i32_0 : i32, i32
  }
  func.func @transform_5(%arg0: i32) -> (i32, i32) {
    %c0_i32 = arith.constant 0 : i32
    %c0_i32_0 = arith.constant 0 : i32
    %c0_i32_1 = arith.constant 0 : i32
    return %c0_i32, %c0_i32_0 : i32, i32
  }
  func.func @transform_6(%arg0: i32) -> (i32, i32, i32) {
    %c0_i32 = arith.constant 0 : i32
    %c0_i32_0 = arith.constant 0 : i32
    %c0_i32_1 = arith.constant 0 : i32
    return %arg0, %c0_i32, %c0_i32_0 : i32, i32, i32
  }
}

</mosaic_0001>

<llo_original>
// kernel: tpu_custom_call.1
$region0: #{tpu_custom_call.1}
  #allocation0 [shape = 'u32[]', space=smem, size = 0x4, offset = 0x4, fixed_abs, tag = 'smem constant byte address 0x4 - core index']
  #allocation1 [shape = 'u32[144,128]{1,0:T(1,128)}', space=vmem, size = 0x12000, scoped, tag = 'internal scratch']
  #allocation2 [shape = 'bf16[128,384]{1,0:T(16,128)(2,1)}', space=vmem, size = 0x18000, scoped, tag = 'scratch operand']
  %s0 = inlined_call_operand.hbm [shape: bf16[2,8,504], index: 0, kind: input, shape index: {}]
  %s1 = inlined_call_operand.vmem [shape: f32[1,504], index: 1, kind: input, shape index: {}]
  %s2 = inlined_call_operand.vmem [shape: bf16[5,8], index: 2, kind: input, shape index: {}]
  %s3 = inlined_call_operand.vmem [shape: f32[5,1], index: 3, kind: input, shape index: {}]
  %s4 = inlined_call_operand.vmem [shape: bf16[8,128], index: 4, kind: input, shape index: {}]
  %s5 = inlined_call_operand.vmem [shape: f32[8,1], index: 5, kind: input, shape index: {}]
  %s6 = inlined_call_operand.hbm [shape: f32[2,8,384], index: 6, kind: output, shape index: {}]
  %s7 = sld [smem:[#allocation0]]
  $region61: #{tpu_custom_call.1} parent=0
    _
  %s9 = ssub.s32 1, %s7
  %s10 = scalar_select 0, %s9, %s7
  $region1: #{tpu_custom_call.1} parent=0
    #allocation3 [shape = 'u8[16384]{0}', space=vmem, size = 0x4000, scoped, tag = 'input window, operand 0']
    #allocation4 [shape = 's32[2]{0}', space=sflag, size = 0x8, scoped, tag = 'scoped memory for tpu_custom_call.1']
    #allocation5 [shape = 's32[2]{0}', space=sflag, size = 0x8, scoped, tag = 'scoped memory for tpu_custom_call.1']
    #allocation6 [shape = 'u8[24576]{0}', space=vmem, size = 0x6000, scoped, tag = 'output window, operand 0']
    %11 = vsyncpa [#allocation4], 0
    %s12 = scalar_lea.sflag [#allocation4], 1
    %13 = vsyncpa %s12, 0
    %14 = vsyncpa [#allocation5], 0
    %s15 = scalar_lea.sflag [#allocation5], 1
    %16 = vsyncpa %s15, 0
    loop: start=0, step=1, limit=4
    $region2: #{tpu_custom_call.1} parent=1 // loop_pre_header
      _
    $region3: #{tpu_custom_call.1} parent=1 // loop_header
      %s18 = sphi 0, %s22
      %p19 = scmp.ge.s32.totalorder %s18, 4
      %s28 = sphi 0, %s30
      %s31 = sphi 0, %s28
      %s32 = sphi 0, %s31
      %s48 = sphi 0, %s32
      %s52 = sphi 0, %s52
      %s54 = sphi 0, %s52
      %s55 = sphi 0, %s54
      %s69 = sphi 0, %s55
      %s73 = sphi 0, %s73
      %s75 = sphi 0, %s73
      %s76 = sphi 0, %s75
      %s90 = sphi 0, %s76
      %s94 = sphi 0, %s94
      %s96 = sphi 0, %s94
      %s97 = sphi 0, %s96
      %s111 = sphi 0, %s97
      %s115 = sphi 0, %s115
      %s117 = sphi 0, %s115
      %s118 = sphi 0, %s117
      %s132 = sphi 0, %s118
      %s136 = sphi 0, %s136
      %s138 = sphi 0, %s136
      %s139 = sphi 0, %s138
      %s153 = sphi 0, %s139
      %s159 = sphi 0, %s161
      %s162 = sphi 0, %s159
      %s163 = sphi 0, %s162
      %s179 = sphi 0, %s163
    $region4: #{tpu_custom_call.1} parent=1 // loop_header_branch
      %21 = sbr.rel (%p19) target = $region8
    $region5: #{tpu_custom_call.1} parent=1 // loop_body
      %s23 = ssub.s32 %s18, 1
      %s24 = ssub.s32 %s18, 2
      %s25 = sadd.s32 %s18, 1
      %s26 = ssub.s32 %s18, %s25
      %p27 = scmp.eq.s32.totalorder %s26, 0
      %s29 = sadd.s32 %s28, 1
      %s30 = scalar_select %p27, %s28, %s29
      %p33 = pneg %p27
      %p34 = scmp.eq.s32.totalorder %s18, 1
      %p35 = por %p33, %p34
      %p36 = scmp.ne.s32.totalorder %s28, %s31
      %p37 = scmp.eq.s32.totalorder %s18, 0
      %p38 = por %p36, %p37
      %p39 = scmp.ne.s32.totalorder %s28, %s31
      %p40 = scmp.eq.s32.totalorder %s23, 1
      %p41 = por %p39, %p40
      %p42 = scmp.ne.s32.totalorder %s31, %s32
      %p43 = scmp.eq.s32.totalorder %s23, 0
      %p44 = por %p42, %p43
      %p45 = scmp.ne.s32.totalorder %s31, %s32
      %p46 = scmp.eq.s32.totalorder %s24, 1
      %p47 = por %p45, %p46
      %p49 = scmp.ne.s32.totalorder %s32, %s48
      %p50 = scmp.eq.s32.totalorder %s24, 0
      %p51 = por %p49, %p50
      %s53 = sadd.s32 %s52, 1
      %p56 = scmp.eq.s32.totalorder %s18, 1
      %p57 = scmp.ne.s32.totalorder %s52, %s54
      %p58 = scmp.eq.s32.totalorder %s18, 0
      %p59 = por %p57, %p58
      %p60 = scmp.ne.s32.totalorder %s52, %s54
      %p61 = scmp.eq.s32.totalorder %s23, 1
      %p62 = por %p60, %p61
      %p63 = scmp.ne.s32.totalorder %s54, %s55
      %p64 = scmp.eq.s32.totalorder %s23, 0
      %p65 = por %p63, %p64
      %p66 = scmp.ne.s32.totalorder %s54, %s55
      %p67 = scmp.eq.s32.totalorder %s24, 1
      %p68 = por %p66, %p67
      %p70 = scmp.ne.s32.totalorder %s55, %s69
      %p71 = scmp.eq.s32.totalorder %s24, 0
      %p72 = por %p70, %p71
      %s74 = sadd.s32 %s73, 1
      %p77 = scmp.eq.s32.totalorder %s18, 1
      %p78 = scmp.ne.s32.totalorder %s73, %s75
      %p79 = scmp.eq.s32.totalorder %s18, 0
      %p80 = por %p78, %p79
      %p81 = scmp.ne.s32.totalorder %s73, %s75
      %p82 = scmp.eq.s32.totalorder %s23, 1
      %p83 = por %p81, %p82
      %p84 = scmp.ne.s32.totalorder %s75, %s76
      %p85 = scmp.eq.s32.totalorder %s23, 0
      %p86 = por %p84, %p85
      %p87 = scmp.ne.s32.totalorder %s75, %s76
      %p88 = scmp.eq.s32.totalorder %s24, 1
      %p89 = por %p87, %p88
      %p91 = scmp.ne.s32.totalorder %s76, %s90
      %p92 = scmp.eq.s32.totalorder %s24, 0
      %p93 = por %p91, %p92
      %s95 = sadd.s32 %s94, 1
      %p98 = scmp.eq.s32.totalorder %s18, 1
      %p99 = scmp.ne.s32.totalorder %s94, %s96
      %p100 = scmp.eq.s32.totalorder %s18, 0
      %p101 = por %p99, %p100
      %p102 = scmp.ne.s32.totalorder %s94, %s96
      %p103 = scmp.eq.s32.totalorder %s23, 1
      %p104 = por %p102, %p103
      %p105 = scmp.ne.s32.totalorder %s96, %s97
      %p106 = scmp.eq.s32.totalorder %s23, 0
      %p107 = por %p105, %p106
      %p108 = scmp.ne.s32.totalorder %s96, %s97
      %p109 = scmp.eq.s32.totalorder %s24, 1
      %p110 = por %p108, %p109
      %p112 = scmp.ne.s32.totalorder %s97, %s111
      %p113 = scmp.eq.s32.totalorder %s24, 0
      %p114 = por %p112, %p113
      %s116 = sadd.s32 %s115, 1
      %p119 = scmp.eq.s32.totalorder %s18, 1
      %p120 = scmp.ne.s32.totalorder %s115, %s117
      %p121 = scmp.eq.s32.totalorder %s18, 0
      %p122 = por %p120, %p121
      %p123 = scmp.ne.s32.totalorder %s115, %s117
      %p124 = scmp.eq.s32.totalorder %s23, 1
      %p125 = por %p123, %p124
      %p126 = scmp.ne.s32.totalorder %s117, %s118
      %p127 = scmp.eq.s32.totalorder %s23, 0
      %p128 = por %p126, %p127
      %p129 = scmp.ne.s32.totalorder %s117, %s118
      %p130 = scmp.eq.s32.totalorder %s24, 1
      %p131 = por %p129, %p130
      %p133 = scmp.ne.s32.totalorder %s118, %s132
      %p134 = scmp.eq.s32.totalorder %s24, 0
      %p135 = por %p133, %p134
      %s137 = sadd.s32 %s136, 1
      %p140 = scmp.eq.s32.totalorder %s18, 1
      %p141 = scmp.ne.s32.totalorder %s136, %s138
      %p142 = scmp.eq.s32.totalorder %s18, 0
      %p143 = por %p141, %p142
      %p144 = scmp.ne.s32.totalorder %s136, %s138
      %p145 = scmp.eq.s32.totalorder %s23, 1
      %p146 = por %p144, %p145
      %p147 = scmp.ne.s32.totalorder %s138, %s139
      %p148 = scmp.eq.s32.totalorder %s23, 0
      %p149 = por %p147, %p148
      %p150 = scmp.ne.s32.totalorder %s138, %s139
      %p151 = scmp.eq.s32.totalorder %s24, 1
      %p152 = por %p150, %p151
      %p154 = scmp.ne.s32.totalorder %s139, %s153
      %p155 = scmp.eq.s32.totalorder %s24, 0
      %p156 = por %p154, %p155
      %s157 = ssub.s32 %s18, %s25
      %p158 = scmp.eq.s32.totalorder %s157, 0
      %s160 = sadd.s32 %s159, 1
      %s161 = scalar_select %p158, %s159, %s160
      %p164 = pneg %p158
      %p165 = scmp.eq.s32.totalorder %s18, 1
      %p166 = por %p164, %p165
      %p167 = scmp.ne.s32.totalorder %s159, %s162
      %p168 = scmp.eq.s32.totalorder %s18, 0
      %p169 = por %p167, %p168
      %p170 = scmp.ne.s32.totalorder %s159, %s162
      %p171 = scmp.eq.s32.totalorder %s23, 1
      %p172 = por %p170, %p171
      %p173 = scmp.ne.s32.totalorder %s162, %s163
      %p174 = scmp.eq.s32.totalorder %s23, 0
      %p175 = por %p173, %p174
      %p176 = scmp.ne.s32.totalorder %s162, %s163
      %p177 = scmp.eq.s32.totalorder %s24, 1
      %p178 = por %p176, %p177
      %p180 = scmp.ne.s32.totalorder %s163, %s179
      %p181 = scmp.eq.s32.totalorder %s24, 0
      %p182 = por %p180, %p181
      %p183 = scmp.le.s32.totalorder 1, %s18
      %p184 = scmp.lt.s32.totalorder %s18, 3
      %p185 = pnand %p183, %p184
      %p186 = pneg %p185
      // Predicated region
      $region9: #{tpu_custom_call.1} parent=5 // pred_check
        _
      $region10: #{tpu_custom_call.1} parent=5 // pred_check_branch
        %188 = sbr.rel (%p185) target = $region12
      $region11: #{tpu_custom_call.1} parent=5 // pred_region
        %s189 = ssub.s32 %s18, 1
        // Predicated region
        $region13: #{tpu_custom_call.1} parent=11 // pred_check
          %p190 = pneg %p65
        $region14: #{tpu_custom_call.1} parent=11 // pred_check_branch
          %192 = sbr.rel (%p190) target = $region16
        $region15: #{tpu_custom_call.1} parent=11 // pred_region
          _
        $region16: #{tpu_custom_call.1} parent=11 // pred_fallthru
          _
        // Predicated region
        $region17: #{tpu_custom_call.1} parent=11 // pred_check
          %p193 = pneg %p86
        $region18: #{tpu_custom_call.1} parent=11 // pred_check_branch
          %195 = sbr.rel (%p193) target = $region20
        $region19: #{tpu_custom_call.1} parent=11 // pred_region
          _
        $region20: #{tpu_custom_call.1} parent=11 // pred_fallthru
          _
        // Predicated region
        $region21: #{tpu_custom_call.1} parent=11 // pred_check
          %p196 = pneg %p107
        $region22: #{tpu_custom_call.1} parent=11 // pred_check_branch
          %198 = sbr.rel (%p196) target = $region24
        $region23: #{tpu_custom_call.1} parent=11 // pred_region
          _
        $region24: #{tpu_custom_call.1} parent=11 // pred_fallthru
          _
        // Predicated region
        $region25: #{tpu_custom_call.1} parent=11 // pred_check
          %p199 = pneg %p128
        $region26: #{tpu_custom_call.1} parent=11 // pred_check_branch
          %201 = sbr.rel (%p199) target = $region28
        $region27: #{tpu_custom_call.1} parent=11 // pred_region
          _
        $region28: #{tpu_custom_call.1} parent=11 // pred_fallthru
          _
        // Predicated region
        $region29: #{tpu_custom_call.1} parent=11 // pred_check
          %p202 = pneg %p149
        $region30: #{tpu_custom_call.1} parent=11 // pred_check_branch
          %204 = sbr.rel (%p202) target = $region32
        $region31: #{tpu_custom_call.1} parent=11 // pred_region
          _
        $region32: #{tpu_custom_call.1} parent=11 // pred_fallthru
          _
      $region12: #{tpu_custom_call.1} parent=5 // pred_fallthru
        _
      %p205 = scmp.lt.s32.totalorder %s18, 2
      // Predicated region
      $region33: #{tpu_custom_call.1} parent=5 // pred_check
        %p206 = pneg %p205
      $region34: #{tpu_custom_call.1} parent=5 // pred_check_branch
        %208 = sbr.rel (%p206) target = $region36
      $region35: #{tpu_custom_call.1} parent=5 // pred_region
        // Predicated region
        $region37: #{tpu_custom_call.1} parent=35 // pred_check
          %p209 = pneg %p38
        $region38: #{tpu_custom_call.1} parent=35 // pred_check_branch
          %211 = sbr.rel (%p209) target = $region40
        $region39: #{tpu_custom_call.1} parent=35 // pred_region
          %s212 = sand.u32 %s28, 1
          %s213 = scalar_lea.sflag [#allocation4], %s212
          %s214 = sand.u32 %s28, 1
          %s215 = smul.addr %s214, 16
          %s216 = scalar_lea.vmem [#allocation3], %s215
          %s218 = ssub.s32 256, 256
          %219 = vsyncadd %s213, %s218
          %s220 = smul.addr %s18, 4
          %s221 = smul.addr %s220, 64
          %s222 = scalar_lea.hbm %s0, %s221
          %s224 = sshll.u32 %s216, 4
          %s225 = int_to_ptr.vmem [resolvable:$true] %s224
          %227 = dma.hbm_to_vmem [thread:$0]  %s222, 256, %s225, %s213
        $region40: #{tpu_custom_call.1} parent=35 // pred_fallthru
          _
      $region36: #{tpu_custom_call.1} parent=5 // pred_fallthru
        _
      %p228 = scmp.le.s32.totalorder 1, %s18
      %p229 = scmp.lt.s32.totalorder %s18, 3
      %p230 = pnand %p228, %p229
      %p231 = pneg %p230
      // Predicated region
      $region41: #{tpu_custom_call.1} parent=5 // pred_check
        _
      $region42: #{tpu_custom_call.1} parent=5 // pred_check_branch
        %233 = sbr.rel (%p230) target = $region44
      $region43: #{tpu_custom_call.1} parent=5 // pred_region
        %s234 = ssub.s32 %s18, 1
        %s235 = sand.u32 %s31, 1
        %s236 = scalar_lea.sflag [#allocation4], %s235
        %s237 = sand.u32 %s31, 1
        %s238 = smul.addr %s237, 16
        %s239 = scalar_lea.vmem [#allocation3], %s238
        // Predicated region
        $region45: #{tpu_custom_call.1} parent=43 // pred_check
          %p240 = pneg %p44
        $region46: #{tpu_custom_call.1} parent=43 // pred_check_branch
          %242 = sbr.rel (%p240) target = $region48
        $region47: #{tpu_custom_call.1} parent=43 // pred_region
          %243 = dma.done %s236, 256
        $region48: #{tpu_custom_call.1} parent=43 // pred_fallthru
          _
        %s244 = sand.u32 %s31, 1
        %s245 = scalar_lea.sflag [#allocation4], %s244
        %s246 = sand.u32 %s31, 1
        %s247 = smul.addr %s246, 16
        %s248 = scalar_lea.vmem [#allocation3], %s247
        %p249 = pneg %p44
        %p250 = pneg %p41
        %p251 = pneg %p65
        %p252 = pneg %p62
        %p253 = pneg %p86
        %p254 = pneg %p83
        %p255 = pneg %p107
        %p256 = pneg %p104
        %p257 = pneg %p128
        %p258 = pneg %p125
        %p259 = pneg %p149
        %p260 = pneg %p146
        %p261 = pneg %p175
        %p262 = pneg %p172
        %s263 = sand.u32 %s162, 1
        %s264 = scalar_lea.sflag [#allocation5], %s263
        %s265 = sand.u32 %s162, 1
        %s266 = smul.addr %s265, 24
        %s267 = scalar_lea.vmem [#allocation6], %s266
        %v269 = vld [vmem:[%s239] sm:$0xff]
        %v270 = vld [vmem:[%s239 + $0x8] sm:$0xff]
        %v271 = vld [vmem:[%s2] sm:$0x7]
        %v272 = vld [vmem:[%s3] sm:$0x1f]
        %274 = vset.pattern.permute.xlu0 0
        %275 = vperm.xlu0 %274, %v272
        %v276 = vpop.permute.xlu0 %275
        %v280 = vunpack.c.l.b16 %v269
        %v281 = vunpack.c.h.b16 %v269
        %v282 = vunpack.c.l.b16 %v270
        %v283 = vunpack.c.h.b16 %v270
        %v284 = vpack.c.b16 %v280, %v280
        %v285 = vpack.c.b16 %v281, %v281
        %v286 = vpack.c.b16 %v282, %v282
        %v287 = vpack.c.b16 %v283, %v283
        %vm288 = vcmask 64512
        %v290 = vsel %vm288, %v271, 0
        %vm292 = vcmask 1043456
        %v294 = vsel %vm292, %v284, 0
        %v297 = vsel %vm292, %v285, 0
        %v300 = vsel %vm292, %v286, 0
        %v303 = vsel %vm292, %v287, 0
        %305 = vmatprep.subr.bf16.mxu0 %v297
        %306 = vmatpush1.bf16.msra.mxu0 %v294
        %307 = vmatprep.subr.bf16.mxu0 0
        %308 = vmatpush1.bf16.msra.mxu0 0
        %309 = vmatprep.subr.bf16.mxu0 0
        %310 = vmatpush1.bf16.msra.mxu0 0
        %311 = vmatprep.subr.bf16.mxu0 0
        %312 = vmatpush1.bf16.msra.mxu0 0
        %313 = vmatprep.subr.bf16.mxu0 0
        %314 = vmatpush1.bf16.msra.mxu0 0
        %315 = vmatprep.subr.bf16.mxu0 0
        %316 = vmatpush1.bf16.msra.mxu0 0
        %317 = vmatprep.subr.bf16.mxu0 0
        %318 = vmatpush1.bf16.msra.mxu0 0
        %319 = vmatprep.subr.bf16.mxu0 0
        %320 = vmatpush1.bf16.msra.mxu0 0
        %321 = vmatprep.subr.bf16.mxu0 0
        %322 = vmatpush1.bf16.msra.mxu0 0
        %323 = vmatprep.subr.bf16.mxu0 0
        %324 = vmatpush1.bf16.msra.mxu0 0
        %325 = vmatprep.subr.bf16.mxu0 0
        %326 = vmatpush1.bf16.msra.mxu0 0
        %327 = vmatprep.subr.bf16.mxu0 0
        %328 = vmatpush1.bf16.msra.mxu0 0
        %329 = vmatprep.subr.bf16.mxu0 0
        %330 = vmatpush1.bf16.msra.mxu0 0
        %331 = vmatprep.subr.bf16.mxu0 0
        %332 = vmatpush1.bf16.msra.mxu0 0
        %333 = vmatprep.subr.bf16.mxu0 0
        %334 = vmatpush1.bf16.msra.mxu0 0
        %335 = vmatprep.subr.bf16.mxu0 0
        %336 = vmatpush1.bf16.msra.mxu0 0
        %337 = vmatprep.mubr.bf16.mxu0 0
        %338 = vmatmul.mubr.bf16.gmra.mrb[0].mxu0 %v290
        %v339 = vpop.f32.mrb[0].mxu0
        %v340 = vadd.f32 %v276, %v339
        %v341 = vpop.f32.mrb[0].mxu0
        %v342 = vadd.f32 %v276, %v341
        %v343 = vpop.f32.mrb[0].mxu0
        %v344 = vpop.f32.mrb[0].mxu0
        %345 = vdwg.mxu0
        %346 = vmatprep.subr.bf16.mxu0 %v303
        %347 = vmatpush1.bf16.msra.mxu0 %v300
        %348 = vmatprep.subr.bf16.mxu0 0
        %349 = vmatpush1.bf16.msra.mxu0 0
        %350 = vmatprep.subr.bf16.mxu0 0
        %351 = vmatpush1.bf16.msra.mxu0 0
        %352 = vmatprep.subr.bf16.mxu0 0
        %353 = vmatpush1.bf16.msra.mxu0 0
        %354 = vmatprep.subr.bf16.mxu0 0
        %355 = vmatpush1.bf16.msra.mxu0 0
        %356 = vmatprep.subr.bf16.mxu0 0
        %357 = vmatpush1.bf16.msra.mxu0 0
        %358 = vmatprep.subr.bf16.mxu0 0
        %359 = vmatpush1.bf16.msra.mxu0 0
        %360 = vmatprep.subr.bf16.mxu0 0
        %361 = vmatpush1.bf16.msra.mxu0 0
        %362 = vmatprep.subr.bf16.mxu0 0
        %363 = vmatpush1.bf16.msra.mxu0 0
        %364 = vmatprep.subr.bf16.mxu0 0
        %365 = vmatpush1.bf16.msra.mxu0 0
        %366 = vmatprep.subr.bf16.mxu0 0
        %367 = vmatpush1.bf16.msra.mxu0 0
        %368 = vmatprep.subr.bf16.mxu0 0
        %369 = vmatpush1.bf16.msra.mxu0 0
        %370 = vmatprep.subr.bf16.mxu0 0
        %371 = vmatpush1.bf16.msra.mxu0 0
        %372 = vmatprep.subr.bf16.mxu0 0
        %373 = vmatpush1.bf16.msra.mxu0 0
        %374 = vmatprep.subr.bf16.mxu0 0
        %375 = vmatpush1.bf16.msra.mxu0 0
        %376 = vmatprep.subr.bf16.mxu0 0
        %377 = vmatpush1.bf16.msra.mxu0 0
        %378 = vmatprep.mubr.bf16.mxu0 0
        %379 = vmatmul.mubr.bf16.gmra.mrb[0].mxu0 %v290
        %v380 = vpop.f32.mrb[0].mxu0
        %v381 = vadd.f32 %v276, %v380
        %v382 = vpop.f32.mrb[0].mxu0
        %v383 = vadd.f32 %v276, %v382
        %v384 = vpop.f32.mrb[0].mxu0
        %v385 = vpop.f32.mrb[0].mxu0
        %386 = vdwg.mxu0
        %v387 = vadd.f32 %v340, 3.0
        %v388 = vadd.f32 %v342, 3.0
        %v389 = vadd.f32 %v381, 3.0
        %v390 = vadd.f32 %v383, 3.0
        %v391 = vmax.f32 %v387, 0.0
        %v392 = vmax.f32 %v388, 0.0
        %v393 = vmax.f32 %v389, 0.0
        %v394 = vmax.f32 %v390, 0.0
        %v395 = vmin.f32 %v391, 6.0
        %v396 = vmin.f32 %v392, 6.0
        %v397 = vmin.f32 %v393, 6.0
        %v398 = vmin.f32 %v394, 6.0
        %v399 = vmul.f32 %v340, %v395
        %v400 = vmul.f32 %v342, %v396
        %v401 = vmul.f32 %v381, %v397
        %v402 = vmul.f32 %v383, %v398
        %v403 = vmul.f32 %v399, 0.16666667
        %v404 = vmul.f32 %v400, 0.16666667
        %v405 = vmul.f32 %v401, 0.16666667
        %v406 = vmul.f32 %v402, 0.16666667
        %v407 = vld [vmem:[%s1] sm:$0xf]
        %v409 = vlaneseq
        %v410 = vshrl.u32 %v409, 7
        %v411 = vsub.s32 0, %v410
        %v412 = vrot.slane %v407, %v411
        %v413 = vlaneseq
        %v414 = vshrl.u32 %v413, 7
        %v415 = vsub.s32 1, %v414
        %v416 = vrot.slane %v407, %v415
        %v417 = vlaneseq
        %v418 = vshrl.u32 %v417, 7
        %v419 = vsub.s32 2, %v418
        %v420 = vrot.slane %v407, %v419
        %v421 = vlaneseq
        %v422 = vshrl.u32 %v421, 7
        %v423 = vsub.s32 3, %v422
        %v424 = vrot.slane %v407, %v423
        %v429 = vmul.f32 %v403, %v412
        %v430 = vmul.f32 %v404, %v416
        %v431 = vmul.f32 %v405, %v420
        %v432 = vmul.f32 %v406, %v424
        %v433 = vpack.c.bf16 %v429, %v429
        %v434 = vpack.c.bf16 %v430, %v430
        %v435 = vpack.c.bf16 %v431, %v431
        %vm436 = vcmask 1042432
        %vm437 = vsmask.f32 2304
        %vm438 = vmand %vm436, %vm437
        %v439 = vld [vmem:[#allocation2] sm:$0x7]
        %v440 = vsel %vm438, %v433, %v439
        %441 = vst [vmem:[#allocation2] sm:$0x7] %v440
        %v442 = vld [vmem:[#allocation2 + $0x8] sm:$0x7]
        %v443 = vsel %vm438, %v434, %v442
        %444 = vst [vmem:[#allocation2 + $0x8] sm:$0x7] %v443
        %v445 = vld [vmem:[#allocation2 + $0x10] sm:$0x7]
        %v446 = vsel %vm438, %v435, %v445
        %447 = vst [vmem:[#allocation2 + $0x10] sm:$0x7] %v446
        %v448 = vpack.c.bf16 %v432, %v432
        %v450 = vshrl.u32 %v433, 16
        %v452 = vrot.slane %v450, 5
        %v453 = vshll.u32 %v433, 16
        %v455 = vrot.slane %v453, 6
        %v456 = vor.u32 %v452, %v455
        %v458 = vshrl.u32 %v434, 16
        %v460 = vrot.slane %v458, 5
        %v461 = vshll.u32 %v434, 16
        %v463 = vrot.slane %v461, 6
        %v464 = vor.u32 %v460, %v463
        %v466 = vshrl.u32 %v435, 16
        %v468 = vrot.slane %v466, 5
        %v469 = vshll.u32 %v435, 16
        %v471 = vrot.slane %v469, 6
        %v472 = vor.u32 %v468, %v471
        %v474 = vshrl.u32 %v448, 16
        %v476 = vrot.slane %v474, 5
        %v477 = vshll.u32 %v448, 16
        %v479 = vrot.slane %v477, 6
        %v480 = vor.u32 %v476, %v479
        %481 = vrot.lane.b32.xlu0 %v456, 127
        %v482 = vpop.permute.xlu0 %481
        %483 = vrot.lane.b32.xlu0 %v464, 127
        %v484 = vpop.permute.xlu0 %483
        %485 = vrot.lane.b32.xlu0 %v472, 127
        %v486 = vpop.permute.xlu0 %485
        %487 = vrot.lane.b32.xlu0 %v480, 127
        %v488 = vpop.permute.xlu0 %487
        %vm489 = vcmask 1039360
        %v490 = vsel %vm489, %v482, %v484
        %v491 = vsel %vm489, %v484, %v486
        %v492 = vsel %vm489, %v486, %v488
        %vm496 = vcmask 1044482
        %vm497 = vsmask.f32 7946
        %vm498 = vmand %vm496, %vm497
        %v499 = vld [vmem:[#allocation2] sm:$0x1c]
        %v500 = vsel %vm498, %v490, %v499
        %501 = vst [vmem:[#allocation2] sm:$0x1c] %v500
        %v502 = vld [vmem:[#allocation2 + $0x8] sm:$0x1c]
        %v503 = vsel %vm498, %v491, %v502
        %504 = vst [vmem:[#allocation2 + $0x8] sm:$0x1c] %v503
        %v505 = vld [vmem:[#allocation2 + $0x10] sm:$0x1c]
        %v506 = vsel %vm498, %v492, %v505
        %507 = vst [vmem:[#allocation2 + $0x10] sm:$0x1c] %v506
        %v512 = vrot.slane %v433, 3
        %v513 = vrot.slane %v434, 3
        %v514 = vrot.slane %v435, 3
        %v515 = vrot.slane %v448, 3
        %516 = vrot.lane.b32.xlu0 %v512, 126
        %v517 = vpop.permute.xlu0 %516
        %518 = vrot.lane.b32.xlu0 %v513, 126
        %v519 = vpop.permute.xlu0 %518
        %520 = vrot.lane.b32.xlu0 %v514, 126
        %v521 = vpop.permute.xlu0 %520
        %522 = vrot.lane.b32.xlu0 %v515, 126
        %v523 = vpop.permute.xlu0 %522
        %vm524 = vcmask 1031168
        %v525 = vsel %vm524, %v517, %v519
        %v526 = vsel %vm524, %v519, %v521
        %v527 = vsel %vm524, %v521, %v523
        %vm531 = vcmask 1047557
        %vm532 = vsmask.f32 7424
        %vm533 = vmand %vm531, %vm532
        %v534 = vld [vmem:[#allocation2] sm:$0xe0]
        %v535 = vsel %vm533, %v525, %v534
        %536 = vst [vmem:[#allocation2] sm:$0xe0] %v535
        %v537 = vld [vmem:[#allocation2 + $0x8] sm:$0xe0]
        %v538 = vsel %vm533, %v526, %v537
        %539 = vst [vmem:[#allocation2 + $0x8] sm:$0xe0] %v538
        %v540 = vld [vmem:[#allocation2 + $0x10] sm:$0xe0]
        %v541 = vsel %vm533, %v527, %v540
        %542 = vst [vmem:[#allocation2 + $0x10] sm:$0xe0] %v541
        %v543 = vrot.slane %v453, 1
        %v544 = vrot.slane %v461, 1
        %v545 = vrot.slane %v469, 1
        %v546 = vrot.slane %v477, 1
        %v547 = vor.u32 %v450, %v543
        %v548 = vor.u32 %v458, %v544
        %v549 = vor.u32 %v466, %v545
        %v550 = vor.u32 %v474, %v546
        %551 = vrot.lane.b32.xlu0 %v543, 125
        %v552 = vpop.permute.xlu0 %551
        %553 = vrot.lane.b32.xlu0 %v544, 125
        %v554 = vpop.permute.xlu0 %553
        %555 = vrot.lane.b32.xlu0 %v545, 125
        %v556 = vpop.permute.xlu0 %555
        %557 = vrot.lane.b32.xlu0 %v546, 125
        %v558 = vpop.permute.xlu0 %557
        %559 = vrot.lane.b32.xlu0 %v547, 125
        %v560 = vpop.permute.xlu0 %559
        %561 = vrot.lane.b32.xlu0 %v548, 125
        %v562 = vpop.permute.xlu0 %561
        %563 = vrot.lane.b32.xlu0 %v549, 125
        %v564 = vpop.permute.xlu0 %563
        %565 = vrot.lane.b32.xlu0 %v550, 125
        %v566 = vpop.permute.xlu0 %565
        %vm567 = vcmask 1022976
        %v568 = vsel %vm567, %v552, %v554
        %v569 = vsel %vm567, %v554, %v556
        %v570 = vsel %vm567, %v556, %v558
        %v571 = vsel %vm567, %v560, %v562
        %v572 = vsel %vm567, %v562, %v564
        %v573 = vsel %vm567, %v564, %v566
        %vm580 = vcmask 1047559
        %vm581 = vsmask.f32 7966
        %vm582 = vmand %vm580, %vm581
        %v583 = vld [vmem:[#allocation2] sm:$0x80]
        %v584 = vsel %vm582, %v568, %v583
        %585 = vst [vmem:[#allocation2] sm:$0x80] %v584
        %v586 = vld [vmem:[#allocation2 + $0x8] sm:$0x80]
        %v587 = vsel %vm582, %v569, %v586
        %588 = vst [vmem:[#allocation2 + $0x8] sm:$0x80] %v587
        %v589 = vld [vmem:[#allocation2 + $0x10] sm:$0x80]
        %v590 = vsel %vm582, %v570, %v589
        %591 = vst [vmem:[#allocation2 + $0x10] sm:$0x80] %v590
        %592 = vst [vmem:[#allocation2 + $0x18] sm:$0x3] %v571
        %593 = vst [vmem:[#allocation2 + $0x20] sm:$0x3] %v572
        %594 = vst [vmem:[#allocation2 + $0x28] sm:$0x3] %v573
        %v595 = vrot.slane %v433, 6
        %v596 = vrot.slane %v434, 6
        %v597 = vrot.slane %v435, 6
        %v598 = vrot.slane %v448, 6
        %599 = vrot.lane.b32.xlu0 %v595, 124
        %v600 = vpop.permute.xlu0 %599
        %601 = vrot.lane.b32.xlu0 %v596, 124
        %v602 = vpop.permute.xlu0 %601
        %603 = vrot.lane.b32.xlu0 %v597, 124
        %v604 = vpop.permute.xlu0 %603
        %605 = vrot.lane.b32.xlu0 %v598, 124
        %v606 = vpop.permute.xlu0 %605
        %vm607 = vcmask 1014784
        %v608 = vsel %vm607, %v600, %v602
        %v609 = vsel %vm607, %v602, %v604
        %v610 = vsel %vm607, %v604, %v606
        %vm614 = vsmask.f32 4352
        %vm615 = vmand %vm496, %vm614
        %v616 = vld [vmem:[#allocation2 + $0x18] sm:$0x1c]
        %v617 = vsel %vm615, %v608, %v616
        %618 = vst [vmem:[#allocation2 + $0x18] sm:$0x1c] %v617
        %v619 = vld [vmem:[#allocation2 + $0x20] sm:$0x1c]
        %v620 = vsel %vm615, %v609, %v619
        %621 = vst [vmem:[#allocation2 + $0x20] sm:$0x1c] %v620
        %v622 = vld [vmem:[#allocation2 + $0x28] sm:$0x1c]
        %v623 = vsel %vm615, %v610, %v622
        %624 = vst [vmem:[#allocation2 + $0x28] sm:$0x1c] %v623
        %v625 = vrot.slane %v450, 3
        %v626 = vrot.slane %v453, 4
        %v627 = vor.u32 %v625, %v626
        %v628 = vrot.slane %v458, 3
        %v629 = vrot.slane %v461, 4
        %v630 = vor.u32 %v628, %v629
        %v631 = vrot.slane %v466, 3
        %v632 = vrot.slane %v469, 4
        %v633 = vor.u32 %v631, %v632
        %v634 = vrot.slane %v474, 3
        %v635 = vrot.slane %v477, 4
        %v636 = vor.u32 %v634, %v635
        %637 = vrot.lane.b32.xlu0 %v627, 104
        %v638 = vpop.permute.xlu0 %637
        %639 = vrot.lane.b32.xlu0 %v630, 104
        %v640 = vpop.permute.xlu0 %639
        %641 = vrot.lane.b32.xlu0 %v633, 104
        %v642 = vpop.permute.xlu0 %641
        %643 = vrot.lane.b32.xlu0 %v636, 104
        %v644 = vpop.permute.xlu0 %643
        %vm645 = vcmask 850944
        %v646 = vsel %vm645, %v638, %v640
        %v647 = vsel %vm645, %v640, %v642
        %v648 = vsel %vm645, %v642, %v644
        %vm652 = vcmask 1046532
        %vm653 = vsmask.f32 7954
        %vm654 = vmand %vm652, %vm653
        %v655 = vld [vmem:[#allocation2 + $0x18] sm:$0x70]
        %v656 = vsel %vm654, %v646, %v655
        %657 = vst [vmem:[#allocation2 + $0x18] sm:$0x70] %v656
        %v658 = vld [vmem:[#allocation2 + $0x20] sm:$0x70]
        %v659 = vsel %vm654, %v647, %v658
        %660 = vst [vmem:[#allocation2 + $0x20] sm:$0x70] %v659
        %v661 = vld [vmem:[#allocation2 + $0x28] sm:$0x70]
        %v662 = vsel %vm654, %v648, %v661
        %663 = vst [vmem:[#allocation2 + $0x28] sm:$0x70] %v662
        %v664 = vrot.slane %v433, 1
        %v665 = vrot.slane %v434, 1
        %v666 = vrot.slane %v435, 1
        %v667 = vrot.slane %v448, 1
        %668 = vrot.lane.b32.xlu0 %v664, 103
        %v669 = vpop.permute.xlu0 %668
        %670 = vrot.lane.b32.xlu0 %v665, 103
        %v671 = vpop.permute.xlu0 %670
        %672 = vrot.lane.b32.xlu0 %v666, 103
        %v673 = vpop.permute.xlu0 %672
        %674 = vrot.lane.b32.xlu0 %v667, 103
        %v675 = vpop.permute.xlu0 %674
        %vm676 = vcmask 842752
        %v677 = vsel %vm676, %v669, %v671
        %v678 = vsel %vm676, %v671, %v673
        %v679 = vsel %vm676, %v673, %v675
        %683 = vst [vmem:[#allocation2 + $0x18] sm:$0x80] %v677
        %684 = vst [vmem:[#allocation2 + $0x20] sm:$0x80] %v678
        %685 = vst [vmem:[#allocation2 + $0x28] sm:$0x80] %v679
        %vm686 = vcmask 1041408
        %vm687 = vsmask.f32 1280
        %vm688 = vmand %vm686, %vm687
        %v689 = vld [vmem:[#allocation2 + $0x30] sm:$0x3]
        %v690 = vsel %vm688, %v677, %v689
        %691 = vst [vmem:[#allocation2 + $0x30] sm:$0x3] %v690
        %v692 = vld [vmem:[#allocation2 + $0x38] sm:$0x3]
        %v693 = vsel %vm688, %v678, %v692
        %694 = vst [vmem:[#allocation2 + $0x38] sm:$0x3] %v693
        %v695 = vld [vmem:[#allocation2 + $0x40] sm:$0x3]
        %v696 = vsel %vm688, %v679, %v695
        %697 = vst [vmem:[#allocation2 + $0x40] sm:$0x3] %v696
        %v698 = vrot.slane %v450, 6
        %v699 = vrot.slane %v453, 7
        %v700 = vor.u32 %v698, %v699
        %v701 = vrot.slane %v458, 6
        %v702 = vrot.slane %v461, 7
        %v703 = vor.u32 %v701, %v702
        %v704 = vrot.slane %v466, 6
        %v705 = vrot.slane %v469, 7
        %v706 = vor.u32 %v704, %v705
        %v707 = vrot.slane %v474, 6
        %v708 = vrot.slane %v477, 7
        %v709 = vor.u32 %v707, %v708
        %710 = vrot.lane.b32.xlu0 %v700, 102
        %v711 = vpop.permute.xlu0 %710
        %712 = vrot.lane.b32.xlu0 %v703, 102
        %v713 = vpop.permute.xlu0 %712
        %714 = vrot.lane.b32.xlu0 %v706, 102
        %v715 = vpop.permute.xlu0 %714
        %716 = vrot.lane.b32.xlu0 %v709, 102
        %v717 = vpop.permute.xlu0 %716
        %vm718 = vcmask 834560
        %v719 = vsel %vm718, %v711, %v713
        %v720 = vsel %vm718, %v713, %v715
        %v721 = vsel %vm718, %v715, %v717
        %vm725 = vcmask 1043457
        %vm726 = vsmask.f32 7942
        %vm727 = vmand %vm725, %vm726
        %v728 = vld [vmem:[#allocation2 + $0x30] sm:$0xe]
        %v729 = vsel %vm727, %v719, %v728
        %730 = vst [vmem:[#allocation2 + $0x30] sm:$0xe] %v729
        %v731 = vld [vmem:[#allocation2 + $0x38] sm:$0xe]
        %v732 = vsel %vm727, %v720, %v731
        %733 = vst [vmem:[#allocation2 + $0x38] sm:$0xe] %v732
        %v734 = vld [vmem:[#allocation2 + $0x40] sm:$0xe]
        %v735 = vsel %vm727, %v721, %v734
        %736 = vst [vmem:[#allocation2 + $0x40] sm:$0xe] %v735
        %v737 = vrot.slane %v433, 4
        %v738 = vrot.slane %v434, 4
        %v739 = vrot.slane %v435, 4
        %v740 = vrot.slane %v448, 4
        %741 = vrot.lane.b32.xlu0 %v737, 101
        %v742 = vpop.permute.xlu0 %741
        %743 = vrot.lane.b32.xlu0 %v738, 101
        %v744 = vpop.permute.xlu0 %743
        %745 = vrot.lane.b32.xlu0 %v739, 101
        %v746 = vpop.permute.xlu0 %745
        %747 = vrot.lane.b32.xlu0 %v740, 101
        %v748 = vpop.permute.xlu0 %747
        %vm749 = vcmask 826368
        %v750 = vsel %vm749, %v742, %v744
        %v751 = vsel %vm749, %v744, %v746
        %v752 = vsel %vm749, %v746, %v748
        %vm756 = vsmask.f32 6400
        %vm757 = vmand %vm652, %vm756
        %v758 = vld [vmem:[#allocation2 + $0x30] sm:$0x70]
        %v759 = vsel %vm757, %v750, %v758
        %760 = vst [vmem:[#allocation2 + $0x30] sm:$0x70] %v759
        %v761 = vld [vmem:[#allocation2 + $0x38] sm:$0x70]
        %v762 = vsel %vm757, %v751, %v761
        %763 = vst [vmem:[#allocation2 + $0x38] sm:$0x70] %v762
        %v764 = vld [vmem:[#allocation2 + $0x40] sm:$0x70]
        %v765 = vsel %vm757, %v752, %v764
        %766 = vst [vmem:[#allocation2 + $0x40] sm:$0x70] %v765
        %v767 = vrot.slane %v450, 1
        %v768 = vrot.slane %v453, 2
        %v769 = vor.u32 %v767, %v768
        %v770 = vrot.slane %v458, 1
        %v771 = vrot.slane %v461, 2
        %v772 = vor.u32 %v770, %v771
        %v773 = vrot.slane %v466, 1
        %v774 = vrot.slane %v469, 2
        %v775 = vor.u32 %v773, %v774
        %v776 = vrot.slane %v474, 1
        %v777 = vrot.slane %v477, 2
        %v778 = vor.u32 %v776, %v777
        %779 = vrot.lane.b32.xlu0 %v769, 100
        %v780 = vpop.permute.xlu0 %779
        %781 = vrot.lane.b32.xlu0 %v772, 100
        %v782 = vpop.permute.xlu0 %781
        %783 = vrot.lane.b32.xlu0 %v775, 100
        %v784 = vpop.permute.xlu0 %783
        %785 = vrot.lane.b32.xlu0 %v778, 100
        %v786 = vpop.permute.xlu0 %785
        %vm787 = vcmask 818176
        %v788 = vsel %vm787, %v780, %v782
        %v789 = vsel %vm787, %v782, %v784
        %v790 = vsel %vm787, %v784, %v786
        %vm794 = vcmask 1047558
        %vm795 = vsmask.f32 7962
        %vm796 = vmand %vm794, %vm795
        %v797 = vld [vmem:[#allocation2 + $0x30] sm:$0xc0]
        %v798 = vsel %vm796, %v788, %v797
        %799 = vst [vmem:[#allocation2 + $0x30] sm:$0xc0] %v798
        %v800 = vld [vmem:[#allocation2 + $0x38] sm:$0xc0]
        %v801 = vsel %vm796, %v789, %v800
        %802 = vst [vmem:[#allocation2 + $0x38] sm:$0xc0] %v801
        %v803 = vld [vmem:[#allocation2 + $0x40] sm:$0xc0]
        %v804 = vsel %vm796, %v790, %v803
        %805 = vst [vmem:[#allocation2 + $0x40] sm:$0xc0] %v804
        %806 = vst [vmem:[#allocation2 + $0x48] sm:$0x1] %v788
        %807 = vst [vmem:[#allocation2 + $0x50] sm:$0x1] %v789
        %808 = vst [vmem:[#allocation2 + $0x58] sm:$0x1] %v790
        %v809 = vrot.slane %v433, 7
        %v810 = vrot.slane %v434, 7
        %v811 = vrot.slane %v435, 7
        %v812 = vrot.slane %v448, 7
        %813 = vrot.lane.b32.xlu0 %v809, 80
        %v814 = vpop.permute.xlu0 %813
        %815 = vrot.lane.b32.xlu0 %v810, 80
        %v816 = vpop.permute.xlu0 %815
        %817 = vrot.lane.b32.xlu0 %v811, 80
        %v818 = vpop.permute.xlu0 %817
        %819 = vrot.lane.b32.xlu0 %v812, 80
        %v820 = vpop.permute.xlu0 %819
        %vm821 = vcmask 654336
        %v822 = vsel %vm821, %v814, %v816
        %v823 = vsel %vm821, %v816, %v818
        %v824 = vsel %vm821, %v818, %v820
        %vm828 = vsmask.f32 3328
        %vm829 = vmand %vm725, %vm828
        %v830 = vld [vmem:[#allocation2 + $0x48] sm:$0xe]
        %v831 = vsel %vm829, %v822, %v830
        %832 = vst [vmem:[#allocation2 + $0x48] sm:$0xe] %v831
        %v833 = vld [vmem:[#allocation2 + $0x50] sm:$0xe]
        %v834 = vsel %vm829, %v823, %v833
        %835 = vst [vmem:[#allocation2 + $0x50] sm:$0xe] %v834
        %v836 = vld [vmem:[#allocation2 + $0x58] sm:$0xe]
        %v837 = vsel %vm829, %v824, %v836
        %838 = vst [vmem:[#allocation2 + $0x58] sm:$0xe] %v837
        %v839 = vrot.slane %v450, 4
        %v840 = vrot.slane %v453, 5
        %v841 = vor.u32 %v839, %v840
        %v842 = vrot.slane %v458, 4
        %v843 = vrot.slane %v461, 5
        %v844 = vor.u32 %v842, %v843
        %v845 = vrot.slane %v466, 4
        %v846 = vrot.slane %v469, 5
        %v847 = vor.u32 %v845, %v846
        %v848 = vrot.slane %v474, 4
        %v849 = vrot.slane %v477, 5
        %v850 = vor.u32 %v848, %v849
        %851 = vrot.lane.b32.xlu0 %v841, 79
        %v852 = vpop.permute.xlu0 %851
        %853 = vrot.lane.b32.xlu0 %v844, 79
        %v854 = vpop.permute.xlu0 %853
        %855 = vrot.lane.b32.xlu0 %v847, 79
        %v856 = vpop.permute.xlu0 %855
        %857 = vrot.lane.b32.xlu0 %v850, 79
        %v858 = vpop.permute.xlu0 %857
        %vm859 = vcmask 646144
        %v860 = vsel %vm859, %v852, %v854
        %v861 = vsel %vm859, %v854, %v856
        %v862 = vsel %vm859, %v856, %v858
        %vm866 = vcmask 1045507
        %vm867 = vsmask.f32 7950
        %vm868 = vmand %vm866, %vm867
        %v869 = vld [vmem:[#allocation2 + $0x48] sm:$0x38]
        %v870 = vsel %vm868, %v860, %v869
        %871 = vst [vmem:[#allocation2 + $0x48] sm:$0x38] %v870
        %v872 = vld [vmem:[#allocation2 + $0x50] sm:$0x38]
        %v873 = vsel %vm868, %v861, %v872
        %874 = vst [vmem:[#allocation2 + $0x50] sm:$0x38] %v873
        %v875 = vld [vmem:[#allocation2 + $0x58] sm:$0x38]
        %v876 = vsel %vm868, %v862, %v875
        %877 = vst [vmem:[#allocation2 + $0x58] sm:$0x38] %v876
        %v878 = vrot.slane %v433, 2
        %v879 = vrot.slane %v434, 2
        %v880 = vrot.slane %v435, 2
        %v881 = vrot.slane %v448, 2
        %882 = vrot.lane.b32.xlu0 %v878, 78
        %v883 = vpop.permute.xlu0 %882
        %884 = vrot.lane.b32.xlu0 %v879, 78
        %v885 = vpop.permute.xlu0 %884
        %886 = vrot.lane.b32.xlu0 %v880, 78
        %v887 = vpop.permute.xlu0 %886
        %888 = vrot.lane.b32.xlu0 %v881, 78
        %v889 = vpop.permute.xlu0 %888
        %vm890 = vcmask 637952
        %v891 = vsel %vm890, %v883, %v885
        %v892 = vsel %vm890, %v885, %v887
        %v893 = vsel %vm890, %v887, %v889
        %897 = vst [vmem:[#allocation2 + $0x48] sm:$0xc0] %v891
        %898 = vst [vmem:[#allocation2 + $0x50] sm:$0xc0] %v892
        %899 = vst [vmem:[#allocation2 + $0x58] sm:$0xc0] %v893
        %vm900 = vcmask 1040384
        %vm901 = vsmask.f32 256
        %vm902 = vmand %vm900, %vm901
        %v903 = vld [vmem:[#allocation2 + $0x60] sm:$0x1]
        %v904 = vsel %vm902, %v891, %v903
        %905 = vst [vmem:[#allocation2 + $0x60] sm:$0x1] %v904
        %v906 = vld [vmem:[#allocation2 + $0x68] sm:$0x1]
        %v907 = vsel %vm902, %v892, %v906
        %908 = vst [vmem:[#allocation2 + $0x68] sm:$0x1] %v907
        %v909 = vld [vmem:[#allocation2 + $0x70] sm:$0x1]
        %v910 = vsel %vm902, %v893, %v909
        %911 = vst [vmem:[#allocation2 + $0x70] sm:$0x1] %v910
        %v912 = vrot.slane %v450, 7
        %v913 = vor.u32 %v912, %v453
        %v914 = vrot.slane %v458, 7
        %v915 = vor.u32 %v914, %v461
        %v916 = vrot.slane %v466, 7
        %v917 = vor.u32 %v916, %v469
        %v918 = vrot.slane %v474, 7
        %v919 = vor.u32 %v918, %v477
        %920 = vrot.lane.b32.xlu0 %v913, 77
        %v921 = vpop.permute.xlu0 %920
        %922 = vrot.lane.b32.xlu0 %v915, 77
        %v923 = vpop.permute.xlu0 %922
        %924 = vrot.lane.b32.xlu0 %v917, 77
        %v925 = vpop.permute.xlu0 %924
        %926 = vrot.lane.b32.xlu0 %v919, 77
        %v927 = vpop.permute.xlu0 %926
        %vm928 = vcmask 629760
        %v929 = vsel %vm928, %v921, %v923
        %v930 = vsel %vm928, %v923, %v925
        %v931 = vsel %vm928, %v925, %v927
        %vm935 = vsmask.f32 7938
        %vm936 = vmand %vm436, %vm935
        %v937 = vld [vmem:[#allocation2 + $0x60] sm:$0x7]
        %v938 = vsel %vm936, %v929, %v937
        %939 = vst [vmem:[#allocation2 + $0x60] sm:$0x7] %v938
        %v940 = vld [vmem:[#allocation2 + $0x68] sm:$0x7]
        %v941 = vsel %vm936, %v930, %v940
        %942 = vst [vmem:[#allocation2 + $0x68] sm:$0x7] %v941
        %v943 = vld [vmem:[#allocation2 + $0x70] sm:$0x7]
        %v944 = vsel %vm936, %v931, %v943
        %945 = vst [vmem:[#allocation2 + $0x70] sm:$0x7] %v944
        %v946 = vrot.slane %v433, 5
        %v947 = vrot.slane %v434, 5
        %v948 = vrot.slane %v435, 5
        %v949 = vrot.slane %v448, 5
        %950 = vrot.lane.b32.xlu0 %v946, 76
        %v951 = vpop.permute.xlu0 %950
        %952 = vrot.lane.b32.xlu0 %v947, 76
        %v953 = vpop.permute.xlu0 %952
        %954 = vrot.lane.b32.xlu0 %v948, 76
        %v955 = vpop.permute.xlu0 %954
        %956 = vrot.lane.b32.xlu0 %v949, 76
        %v957 = vpop.permute.xlu0 %956
        %vm958 = vcmask 621568
        %v959 = vsel %vm958, %v951, %v953
        %v960 = vsel %vm958, %v953, %v955
        %v961 = vsel %vm958, %v955, %v957
        %vm965 = vsmask.f32 5376
        %vm966 = vmand %vm866, %vm965
        %v967 = vld [vmem:[#allocation2 + $0x60] sm:$0x38]
        %v968 = vsel %vm966, %v959, %v967
        %969 = vst [vmem:[#allocation2 + $0x60] sm:$0x38] %v968
        %v970 = vld [vmem:[#allocation2 + $0x68] sm:$0x38]
        %v971 = vsel %vm966, %v960, %v970
        %972 = vst [vmem:[#allocation2 + $0x68] sm:$0x38] %v971
        %v973 = vld [vmem:[#allocation2 + $0x70] sm:$0x38]
        %v974 = vsel %vm966, %v961, %v973
        %975 = vst [vmem:[#allocation2 + $0x70] sm:$0x38] %v974
        %v976 = vrot.slane %v450, 2
        %v977 = vrot.slane %v453, 3
        %v978 = vor.u32 %v976, %v977
        %v979 = vrot.slane %v458, 2
        %v980 = vrot.slane %v461, 3
        %v981 = vor.u32 %v979, %v980
        %v982 = vrot.slane %v466, 2
        %v983 = vrot.slane %v469, 3
        %v984 = vor.u32 %v982, %v983
        %v985 = vrot.slane %v474, 2
        %v986 = vrot.slane %v477, 3
        %v987 = vor.u32 %v985, %v986
        %988 = vrot.lane.b32.xlu0 %v978, 56
        %v989 = vpop.permute.xlu0 %988
        %990 = vrot.lane.b32.xlu0 %v981, 56
        %v991 = vpop.permute.xlu0 %990
        %992 = vrot.lane.b32.xlu0 %v984, 56
        %v993 = vpop.permute.xlu0 %992
        %994 = vrot.lane.b32.xlu0 %v987, 56
        %v995 = vpop.permute.xlu0 %994
        %vm996 = vcmask 457728
        %v997 = vsel %vm996, %v989, %v991
        %v998 = vsel %vm996, %v991, %v993
        %v999 = vsel %vm996, %v993, %v995
        %vm1003 = vsmask.f32 7958
        %vm1004 = vmand %vm531, %vm1003
        %v1005 = vld [vmem:[#allocation2 + $0x60] sm:$0xe0]
        %v1006 = vsel %vm1004, %v997, %v1005
        %1007 = vst [vmem:[#allocation2 + $0x60] sm:$0xe0] %v1006
        %v1008 = vld [vmem:[#allocation2 + $0x68] sm:$0xe0]
        %v1009 = vsel %vm1004, %v998, %v1008
        %1010 = vst [vmem:[#allocation2 + $0x68] sm:$0xe0] %v1009
        %v1011 = vld [vmem:[#allocation2 + $0x70] sm:$0xe0]
        %v1012 = vsel %vm1004, %v999, %v1011
        %1013 = vst [vmem:[#allocation2 + $0x70] sm:$0xe0] %v1012
        %1014 = vrot.lane.b32.xlu0 %v433, 55
        %v1015 = vpop.permute.xlu0 %1014
        %1016 = vrot.lane.b32.xlu0 %v434, 55
        %v1017 = vpop.permute.xlu0 %1016
        %1018 = vrot.lane.b32.xlu0 %v435, 55
        %v1019 = vpop.permute.xlu0 %1018
        %1020 = vrot.lane.b32.xlu0 %v448, 55
        %v1021 = vpop.permute.xlu0 %1020
        %vm1022 = vcmask 449536
        %v1023 = vsel %vm1022, %v1015, %v1017
        %v1024 = vsel %vm1022, %v1017, %v1019
        %v1025 = vsel %vm1022, %v1019, %v1021
        %v1029 = vld [vmem:[#allocation2 + $0x78] sm:$0x7]
        %v1030 = vsel %vm438, %v1023, %v1029
        %1031 = vst [vmem:[#allocation2 + $0x78] sm:$0x7] %v1030
        %v1032 = vld [vmem:[#allocation2 + $0x80] sm:$0x7]
        %v1033 = vsel %vm438, %v1024, %v1032
        %1034 = vst [vmem:[#allocation2 + $0x80] sm:$0x7] %v1033
        %v1035 = vld [vmem:[#allocation2 + $0x88] sm:$0x7]
        %v1036 = vsel %vm438, %v1025, %v1035
        %1037 = vst [vmem:[#allocation2 + $0x88] sm:$0x7] %v1036
        %1038 = vrot.lane.b32.xlu0 %v456, 54
        %v1039 = vpop.permute.xlu0 %1038
        %1040 = vrot.lane.b32.xlu0 %v464, 54
        %v1041 = vpop.permute.xlu0 %1040
        %1042 = vrot.lane.b32.xlu0 %v472, 54
        %v1043 = vpop.permute.xlu0 %1042
        %1044 = vrot.lane.b32.xlu0 %v480, 54
        %v1045 = vpop.permute.xlu0 %1044
        %vm1046 = vcmask 441344
        %v1047 = vsel %vm1046, %v1039, %v1041
        %v1048 = vsel %vm1046, %v1041, %v1043
        %v1049 = vsel %vm1046, %v1043, %v1045
        %v1053 = vld [vmem:[#allocation2 + $0x78] sm:$0x1c]
        %v1054 = vsel %vm498, %v1047, %v1053
        %1055 = vst [vmem:[#allocation2 + $0x78] sm:$0x1c] %v1054
        %v1056 = vld [vmem:[#allocation2 + $0x80] sm:$0x1c]
        %v1057 = vsel %vm498, %v1048, %v1056
        %1058 = vst [vmem:[#allocation2 + $0x80] sm:$0x1c] %v1057
        %v1059 = vld [vmem:[#allocation2 + $0x88] sm:$0x1c]
        %v1060 = vsel %vm498, %v1049, %v1059
        %1061 = vst [vmem:[#allocation2 + $0x88] sm:$0x1c] %v1060
        %1062 = vrot.lane.b32.xlu0 %v512, 53
        %v1063 = vpop.permute.xlu0 %1062
        %1064 = vrot.lane.b32.xlu0 %v513, 53
        %v1065 = vpop.permute.xlu0 %1064
        %1066 = vrot.lane.b32.xlu0 %v514, 53
        %v1067 = vpop.permute.xlu0 %1066
        %1068 = vrot.lane.b32.xlu0 %v515, 53
        %v1069 = vpop.permute.xlu0 %1068
        %vm1070 = vcmask 433152
        %v1071 = vsel %vm1070, %v1063, %v1065
        %v1072 = vsel %vm1070, %v1065, %v1067
        %v1073 = vsel %vm1070, %v1067, %v1069
        %v1077 = vld [vmem:[#allocation2 + $0x78] sm:$0xe0]
        %v1078 = vsel %vm533, %v1071, %v1077
        %1079 = vst [vmem:[#allocation2 + $0x78] sm:$0xe0] %v1078
        %v1080 = vld [vmem:[#allocation2 + $0x80] sm:$0xe0]
        %v1081 = vsel %vm533, %v1072, %v1080
        %1082 = vst [vmem:[#allocation2 + $0x80] sm:$0xe0] %v1081
        %v1083 = vld [vmem:[#allocation2 + $0x88] sm:$0xe0]
        %v1084 = vsel %vm533, %v1073, %v1083
        %1085 = vst [vmem:[#allocation2 + $0x88] sm:$0xe0] %v1084
        %1086 = vrot.lane.b32.xlu0 %v543, 52
        %v1087 = vpop.permute.xlu0 %1086
        %1088 = vrot.lane.b32.xlu0 %v544, 52
        %v1089 = vpop.permute.xlu0 %1088
        %1090 = vrot.lane.b32.xlu0 %v545, 52
        %v1091 = vpop.permute.xlu0 %1090
        %1092 = vrot.lane.b32.xlu0 %v546, 52
        %v1093 = vpop.permute.xlu0 %1092
        %1094 = vrot.lane.b32.xlu0 %v547, 52
        %v1095 = vpop.permute.xlu0 %1094
        %1096 = vrot.lane.b32.xlu0 %v548, 52
        %v1097 = vpop.permute.xlu0 %1096
        %1098 = vrot.lane.b32.xlu0 %v549, 52
        %v1099 = vpop.permute.xlu0 %1098
        %1100 = vrot.lane.b32.xlu0 %v550, 52
        %v1101 = vpop.permute.xlu0 %1100
        %vm1102 = vcmask 424960
        %v1103 = vsel %vm1102, %v1087, %v1089
        %v1104 = vsel %vm1102, %v1089, %v1091
        %v1105 = vsel %vm1102, %v1091, %v1093
        %v1106 = vsel %vm1102, %v1095, %v1097
        %v1107 = vsel %vm1102, %v1097, %v1099
        %v1108 = vsel %vm1102, %v1099, %v1101
        %v1115 = vld [vmem:[#allocation2 + $0x78] sm:$0x80]
        %v1116 = vsel %vm582, %v1103, %v1115
        %1117 = vst [vmem:[#allocation2 + $0x78] sm:$0x80] %v1116
        %v1118 = vld [vmem:[#allocation2 + $0x80] sm:$0x80]
        %v1119 = vsel %vm582, %v1104, %v1118
        %1120 = vst [vmem:[#allocation2 + $0x80] sm:$0x80] %v1119
        %v1121 = vld [vmem:[#allocation2 + $0x88] sm:$0x80]
        %v1122 = vsel %vm582, %v1105, %v1121
        %1123 = vst [vmem:[#allocation2 + $0x88] sm:$0x80] %v1122
        %1124 = vst [vmem:[#allocation2 + $0x90] sm:$0x3] %v1106
        %1125 = vst [vmem:[#allocation2 + $0x98] sm:$0x3] %v1107
        %1126 = vst [vmem:[#allocation2 + $0xa0] sm:$0x3] %v1108
        %1127 = vrot.lane.b32.xlu0 %v595, 32
        %v1128 = vpop.permute.xlu0 %1127
        %1129 = vrot.lane.b32.xlu0 %v596, 32
        %v1130 = vpop.permute.xlu0 %1129
        %1131 = vrot.lane.b32.xlu0 %v597, 32
        %v1132 = vpop.permute.xlu0 %1131
        %1133 = vrot.lane.b32.xlu0 %v598, 32
        %v1134 = vpop.permute.xlu0 %1133
        %vm1135 = vcmask 261120
        %v1136 = vsel %vm1135, %v1128, %v1130
        %v1137 = vsel %vm1135, %v1130, %v1132
        %v1138 = vsel %vm1135, %v1132, %v1134
        %v1142 = vld [vmem:[#allocation2 + $0x90] sm:$0x1c]
        %v1143 = vsel %vm615, %v1136, %v1142
        %1144 = vst [vmem:[#allocation2 + $0x90] sm:$0x1c] %v1143
        %v1145 = vld [vmem:[#allocation2 + $0x98] sm:$0x1c]
        %v1146 = vsel %vm615, %v1137, %v1145
        %1147 = vst [vmem:[#allocation2 + $0x98] sm:$0x1c] %v1146
        %v1148 = vld [vmem:[#allocation2 + $0xa0] sm:$0x1c]
        %v1149 = vsel %vm615, %v1138, %v1148
        %1150 = vst [vmem:[#allocation2 + $0xa0] sm:$0x1c] %v1149
        %1151 = vrot.lane.b32.xlu0 %v627, 31
        %v1152 = vpop.permute.xlu0 %1151
        %1153 = vrot.lane.b32.xlu0 %v630, 31
        %v1154 = vpop.permute.xlu0 %1153
        %1155 = vrot.lane.b32.xlu0 %v633, 31
        %v1156 = vpop.permute.xlu0 %1155
        %1157 = vrot.lane.b32.xlu0 %v636, 31
        %v1158 = vpop.permute.xlu0 %1157
        %vm1159 = vcmask 252928
        %v1160 = vsel %vm1159, %v1152, %v1154
        %v1161 = vsel %vm1159, %v1154, %v1156
        %v1162 = vsel %vm1159, %v1156, %v1158
        %v1166 = vld [vmem:[#allocation2 + $0x90] sm:$0x70]
        %v1167 = vsel %vm654, %v1160, %v1166
        %1168 = vst [vmem:[#allocation2 + $0x90] sm:$0x70] %v1167
        %v1169 = vld [vmem:[#allocation2 + $0x98] sm:$0x70]
        %v1170 = vsel %vm654, %v1161, %v1169
        %1171 = vst [vmem:[#allocation2 + $0x98] sm:$0x70] %v1170
        %v1172 = vld [vmem:[#allocation2 + $0xa0] sm:$0x70]
        %v1173 = vsel %vm654, %v1162, %v1172
        %1174 = vst [vmem:[#allocation2 + $0xa0] sm:$0x70] %v1173
        %1175 = vrot.lane.b32.xlu0 %v664, 30
        %v1176 = vpop.permute.xlu0 %1175
        %1177 = vrot.lane.b32.xlu0 %v665, 30
        %v1178 = vpop.permute.xlu0 %1177
        %1179 = vrot.lane.b32.xlu0 %v666, 30
        %v1180 = vpop.permute.xlu0 %1179
        %1181 = vrot.lane.b32.xlu0 %v667, 30
        %v1182 = vpop.permute.xlu0 %1181
        %vm1183 = vcmask 244736
        %v1184 = vsel %vm1183, %v1176, %v1178
        %v1185 = vsel %vm1183, %v1178, %v1180
        %v1186 = vsel %vm1183, %v1180, %v1182
        %1190 = vst [vmem:[#allocation2 + $0x90] sm:$0x80] %v1184
        %1191 = vst [vmem:[#allocation2 + $0x98] sm:$0x80] %v1185
        %1192 = vst [vmem:[#allocation2 + $0xa0] sm:$0x80] %v1186
        %v1193 = vld [vmem:[#allocation2 + $0xa8] sm:$0x3]
        %v1194 = vsel %vm688, %v1184, %v1193
        %1195 = vst [vmem:[#allocation2 + $0xa8] sm:$0x3] %v1194
        %v1196 = vld [vmem:[#allocation2 + $0xb0] sm:$0x3]
        %v1197 = vsel %vm688, %v1185, %v1196
        %1198 = vst [vmem:[#allocation2 + $0xb0] sm:$0x3] %v1197
        %v1199 = vld [vmem:[#allocation2 + $0xb8] sm:$0x3]
        %v1200 = vsel %vm688, %v1186, %v1199
        %1201 = vst [vmem:[#allocation2 + $0xb8] sm:$0x3] %v1200
        %1202 = vrot.lane.b32.xlu0 %v700, 29
        %v1203 = vpop.permute.xlu0 %1202
        %1204 = vrot.lane.b32.xlu0 %v703, 29
        %v1205 = vpop.permute.xlu0 %1204
        %1206 = vrot.lane.b32.xlu0 %v706, 29
        %v1207 = vpop.permute.xlu0 %1206
        %1208 = vrot.lane.b32.xlu0 %v709, 29
        %v1209 = vpop.permute.xlu0 %1208
        %vm1210 = vcmask 236544
        %v1211 = vsel %vm1210, %v1203, %v1205
        %v1212 = vsel %vm1210, %v1205, %v1207
        %v1213 = vsel %vm1210, %v1207, %v1209
        %v1217 = vld [vmem:[#allocation2 + $0xa8] sm:$0xe]
        %v1218 = vsel %vm727, %v1211, %v1217
        %1219 = vst [vmem:[#allocation2 + $0xa8] sm:$0xe] %v1218
        %v1220 = vld [vmem:[#allocation2 + $0xb0] sm:$0xe]
        %v1221 = vsel %vm727, %v1212, %v1220
        %1222 = vst [vmem:[#allocation2 + $0xb0] sm:$0xe] %v1221
        %v1223 = vld [vmem:[#allocation2 + $0xb8] sm:$0xe]
        %v1224 = vsel %vm727, %v1213, %v1223
        %1225 = vst [vmem:[#allocation2 + $0xb8] sm:$0xe] %v1224
        %1226 = vrot.lane.b32.xlu0 %v737, 28
        %v1227 = vpop.permute.xlu0 %1226
        %1228 = vrot.lane.b32.xlu0 %v738, 28
        %v1229 = vpop.permute.xlu0 %1228
        %1230 = vrot.lane.b32.xlu0 %v739, 28
        %v1231 = vpop.permute.xlu0 %1230
        %1232 = vrot.lane.b32.xlu0 %v740, 28
        %v1233 = vpop.permute.xlu0 %1232
        %vm1234 = vcmask 228352
        %v1235 = vsel %vm1234, %v1227, %v1229
        %v1236 = vsel %vm1234, %v1229, %v1231
        %v1237 = vsel %vm1234, %v1231, %v1233
        %v1241 = vld [vmem:[#allocation2 + $0xa8] sm:$0x70]
        %v1242 = vsel %vm757, %v1235, %v1241
        %1243 = vst [vmem:[#allocation2 + $0xa8] sm:$0x70] %v1242
        %v1244 = vld [vmem:[#allocation2 + $0xb0] sm:$0x70]
        %v1245 = vsel %vm757, %v1236, %v1244
        %1246 = vst [vmem:[#allocation2 + $0xb0] sm:$0x70] %v1245
        %v1247 = vld [vmem:[#allocation2 + $0xb8] sm:$0x70]
        %v1248 = vsel %vm757, %v1237, %v1247
        %1249 = vst [vmem:[#allocation2 + $0xb8] sm:$0x70] %v1248
        %v1250 = vld [vmem:[#allocation2 + $0xa8] sm:$0xc0]
        %v1251 = vsel %vm796, 0, %v1250
        %1252 = vst [vmem:[#allocation2 + $0xa8] sm:$0xc0] %v1251
        %v1253 = vld [vmem:[#allocation2 + $0xb0] sm:$0xc0]
        %v1254 = vsel %vm796, 0, %v1253
        %1255 = vst [vmem:[#allocation2 + $0xb0] sm:$0xc0] %v1254
        %v1256 = vld [vmem:[#allocation2 + $0xb8] sm:$0xc0]
        %v1257 = vsel %vm796, 0, %v1256
        %1258 = vst [vmem:[#allocation2 + $0xb8] sm:$0xc0] %v1257
        %v1259 = vld [vmem:[%s4] sm:$0xf]
        %v1260 = vld [vmem:[#allocation2] sm:$0xff]
        %v1261 = vld [vmem:[#allocation2 + $0x8] sm:$0xff]
        %v1262 = vld [vmem:[#allocation2 + $0x10] sm:$0xff]
        %v1263 = vld [vmem:[#allocation2 + $0x18] sm:$0xff]
        %v1264 = vld [vmem:[#allocation2 + $0x20] sm:$0xff]
        %v1265 = vld [vmem:[#allocation2 + $0x28] sm:$0xff]
        %v1266 = vld [vmem:[#allocation2 + $0x30] sm:$0xff]
        %v1267 = vld [vmem:[#allocation2 + $0x38] sm:$0xff]
        %v1268 = vld [vmem:[#allocation2 + $0x40] sm:$0xff]
        %v1269 = vld [vmem:[#allocation2 + $0x48] sm:$0xff]
        %v1270 = vld [vmem:[#allocation2 + $0x50] sm:$0xff]
        %v1271 = vld [vmem:[#allocation2 + $0x58] sm:$0xff]
        %v1272 = vld [vmem:[#allocation2 + $0x60] sm:$0xff]
        %v1273 = vld [vmem:[#allocation2 + $0x68] sm:$0xff]
        %v1274 = vld [vmem:[#allocation2 + $0x70] sm:$0xff]
        %v1275 = vld [vmem:[#allocation2 + $0x78] sm:$0xff]
        %v1276 = vld [vmem:[#allocation2 + $0x80] sm:$0xff]
        %v1277 = vld [vmem:[#allocation2 + $0x88] sm:$0xff]
        %v1278 = vld [vmem:[#allocation2 + $0x90] sm:$0xff]
        %v1279 = vld [vmem:[#allocation2 + $0x98] sm:$0xff]
        %v1280 = vld [vmem:[#allocation2 + $0xa0] sm:$0xff]
        %v1281 = vld [vmem:[#allocation2 + $0xa8] sm:$0xff]
        %v1282 = vld [vmem:[#allocation2 + $0xb0] sm:$0xff]
        %v1283 = vld [vmem:[#allocation2 + $0xb8] sm:$0xff]
        %v1284 = vld [vmem:[%s5] sm:$0xff]
        %1286 = vset.pattern.permute.xlu0 0
        %1287 = vperm.xlu0 %1286, %v1284
        %v1288 = vpop.permute.xlu0 %1287
        %1290 = vmatprep.subr.bf16.mxu0 %v1261
        %1291 = vmatpush1.bf16.msra.mxu0 %v1260
        %1292 = vmatprep.subr.bf16.mxu0 %v1264
        %1293 = vmatpush1.bf16.msra.mxu0 %v1263
        %1294 = vmatprep.subr.bf16.mxu0 %v1267
        %1295 = vmatpush1.bf16.msra.mxu0 %v1266
        %1296 = vmatprep.subr.bf16.mxu0 %v1270
        %1297 = vmatpush1.bf16.msra.mxu0 %v1269
        %1298 = vmatprep.subr.bf16.mxu0 %v1273
        %1299 = vmatpush1.bf16.msra.mxu0 %v1272
        %1300 = vmatprep.subr.bf16.mxu0 %v1276
        %1301 = vmatpush1.bf16.msra.mxu0 %v1275
        %1302 = vmatprep.subr.bf16.mxu0 %v1279
        %1303 = vmatpush1.bf16.msra.mxu0 %v1278
        %1304 = vmatprep.subr.bf16.mxu0 %v1282
        %1305 = vmatpush1.bf16.msra.mxu0 %v1281
        %1306 = vmatprep.subr.bf16.mxu0 0
        %1307 = vmatpush1.bf16.msra.mxu0 0
        %1308 = vmatprep.subr.bf16.mxu0 0
        %1309 = vmatpush1.bf16.msra.mxu0 0
        %1310 = vmatprep.subr.bf16.mxu0 0
        %1311 = vmatpush1.bf16.msra.mxu0 0
        %1312 = vmatprep.subr.bf16.mxu0 0
        %1313 = vmatpush1.bf16.msra.mxu0 0
        %1314 = vmatprep.subr.bf16.mxu0 0
        %1315 = vmatpush1.bf16.msra.mxu0 0
        %1316 = vmatprep.subr.bf16.mxu0 0
        %1317 = vmatpush1.bf16.msra.mxu0 0
        %1318 = vmatprep.subr.bf16.mxu0 0
        %1319 = vmatpush1.bf16.msra.mxu0 0
        %1320 = vmatprep.subr.bf16.mxu0 0
        %1321 = vmatpush1.bf16.msra.mxu0 0
        %1322 = vmatprep.mubr.bf16.mxu0 0
        %1323 = vmatmul.mubr.bf16.gmra.mrb[0].mxu0 %v1259
        %v1324 = vpop.f32.mrb[0].mxu0
        %v1325 = vadd.f32 %v1288, %v1324
        %v1326 = vpop.f32.mrb[0].mxu0
        %v1327 = vadd.f32 %v1288, %v1326
        %v1328 = vpop.f32.mrb[0].mxu0
        %v1329 = vpop.f32.mrb[0].mxu0
        %1330 = vdwg.mxu0
        %1331 = vmatprep.subr.bf16.mxu0 0
        %1332 = vmatpush1.bf16.msra.mxu0 %v1262
        %1333 = vmatprep.subr.bf16.mxu0 0
        %1334 = vmatpush1.bf16.msra.mxu0 %v1265
        %1335 = vmatprep.subr.bf16.mxu0 0
        %1336 = vmatpush1.bf16.msra.mxu0 %v1268
        %1337 = vmatprep.subr.bf16.mxu0 0
        %1338 = vmatpush1.bf16.msra.mxu0 %v1271
        %1339 = vmatprep.subr.bf16.mxu0 0
        %1340 = vmatpush1.bf16.msra.mxu0 %v1274
        %1341 = vmatprep.subr.bf16.mxu0 0
        %1342 = vmatpush1.bf16.msra.mxu0 %v1277
        %1343 = vmatprep.subr.bf16.mxu0 0
        %1344 = vmatpush1.bf16.msra.mxu0 %v1280
        %1345 = vmatprep.subr.bf16.mxu0 0
        %1346 = vmatpush1.bf16.msra.mxu0 %v1283
        %1347 = vmatprep.subr.bf16.mxu0 0
        %1348 = vmatpush1.bf16.msra.mxu0 0
        %1349 = vmatprep.subr.bf16.mxu0 0
        %1350 = vmatpush1.bf16.msra.mxu0 0
        %1351 = vmatprep.subr.bf16.mxu0 0
        %1352 = vmatpush1.bf16.msra.mxu0 0
        %1353 = vmatprep.subr.bf16.mxu0 0
        %1354 = vmatpush1.bf16.msra.mxu0 0
        %1355 = vmatprep.subr.bf16.mxu0 0
        %1356 = vmatpush1.bf16.msra.mxu0 0
        %1357 = vmatprep.subr.bf16.mxu0 0
        %1358 = vmatpush1.bf16.msra.mxu0 0
        %1359 = vmatprep.subr.bf16.mxu0 0
        %1360 = vmatpush1.bf16.msra.mxu0 0
        %1361 = vmatprep.subr.bf16.mxu0 0
        %1362 = vmatpush1.bf16.msra.mxu0 0
        %1363 = vmatprep.mubr.bf16.mxu0 0
        %1364 = vmatmul.mubr.bf16.gmra.mrb[0].mxu0 %v1259
        %v1365 = vpop.f32.mrb[0].mxu0
        %v1366 = vadd.f32 %v1288, %v1365
        %v1367 = vpop.f32.mrb[0].mxu0
        %v1368 = vpop.f32.mrb[0].mxu0
        %v1369 = vpop.f32.mrb[0].mxu0
        %1370 = vdwg.mxu0
        %v1371 = vadd.f32 %v1325, 3.0
        %v1372 = vadd.f32 %v1327, 3.0
        %v1373 = vadd.f32 %v1366, 3.0
        %v1374 = vmax.f32 %v1371, 0.0
        %v1375 = vmax.f32 %v1372, 0.0
        %v1376 = vmax.f32 %v1373, 0.0
        %v1377 = vmin.f32 %v1374, 6.0
        %v1378 = vmin.f32 %v1375, 6.0
        %v1379 = vmin.f32 %v1376, 6.0
        %v1380 = vmul.f32 %v1325, %v1377
        %v1381 = vmul.f32 %v1327, %v1378
        %v1382 = vmul.f32 %v1366, %v1379
        %v1383 = vmul.f32 %v1380, 0.16666667
        %v1384 = vmul.f32 %v1381, 0.16666667
        %v1385 = vmul.f32 %v1382, 0.16666667
        %v1386 = vunpack.c.l.bf16 %v269
        %v1387 = vunpack.c.h.bf16 %v269
        %v1388 = vunpack.c.l.bf16 %v270
        %v1389 = vunpack.c.h.bf16 %v270
        %1394 = vrot.lane.b32.xlu0 %v1386, 78
        %v1395 = vpop.permute.xlu0 %1394
        %1396 = vrot.lane.b32.xlu0 %v1387, 78
        %v1397 = vpop.permute.xlu0 %1396
        %1398 = vrot.lane.b32.xlu0 %v1388, 78
        %v1399 = vpop.permute.xlu0 %1398
        %1400 = vrot.lane.b32.xlu0 %v1389, 78
        %v1401 = vpop.permute.xlu0 %1400
        %vm1402 = vcmask 637952
        %v1403 = vsel %vm1402, %v1395, %v1397
        %v1404 = vsel %vm1402, %v1397, %v1399
        %v1405 = vsel %vm1402, %v1399, %v1401
        %v1409 = vadd.f32 %v1383, %v1403
        %v1410 = vadd.f32 %v1384, %v1404
        %v1411 = vadd.f32 %v1385, %v1405
        %1412 = vst [vmem:[%s267] sm:$0xff] %v1409
        %1413 = vst [vmem:[%s267 + $0x8] sm:$0xff] %v1410
        %1414 = vst [vmem:[%s267 + $0x10] sm:$0xff] %v1411
        %s1415 = sand.u32 %s162, 1
        %s1416 = scalar_lea.sflag [#allocation5], %s1415
        %s1417 = sand.u32 %s162, 1
        %s1418 = smul.addr %s1417, 24
        %s1419 = scalar_lea.vmem [#allocation6], %s1418
        // Predicated region
        $region49: #{tpu_custom_call.1} parent=43 // pred_check
          %p1420 = pneg %p172
        $region50: #{tpu_custom_call.1} parent=43 // pred_check_branch
          %1422 = sbr.rel (%p1420) target = $region52
        $region51: #{tpu_custom_call.1} parent=43 // pred_region
          %s1424 = ssub.s32 384, 384
          %1425 = vsyncadd %s1416, %s1424
          %s1426 = smul.addr %s23, 3
          %s1427 = smul.addr %s1426, 128
          %s1428 = scalar_lea.hbm %s6, %s1427
          %s1430 = sshll.u32 %s1419, 4
          %s1431 = int_to_ptr.vmem [resolvable:$true] %s1430
          %1433 = dma.vmem_to_hbm [thread:$0]  %s1431, 384, %s1428, %s1416
        $region52: #{tpu_custom_call.1} parent=43 // pred_fallthru
          _
      $region44: #{tpu_custom_call.1} parent=5 // pred_fallthru
        _
      %p1434 = scmp.le.s32.totalorder 2, %s18
      // Predicated region
      $region53: #{tpu_custom_call.1} parent=5 // pred_check
        %p1435 = pneg %p1434
      $region54: #{tpu_custom_call.1} parent=5 // pred_check_branch
        %1437 = sbr.rel (%p1435) target = $region56
      $region55: #{tpu_custom_call.1} parent=5 // pred_region
        %s1438 = ssub.s32 %s18, 2
        // Predicated region
        $region57: #{tpu_custom_call.1} parent=55 // pred_check
          %p1439 = pneg %p178
        $region58: #{tpu_custom_call.1} parent=55 // pred_check_branch
          %1441 = sbr.rel (%p1439) target = $region60
        $region59: #{tpu_custom_call.1} parent=55 // pred_region
          %s1442 = sand.u32 %s163, 1
          %s1443 = scalar_lea.sflag [#allocation5], %s1442
          %s1444 = sand.u32 %s163, 1
          %s1445 = smul.addr %s1444, 24
          %s1446 = scalar_lea.vmem [#allocation6], %s1445
          %1447 = dma.done %s1443, 384
        $region60: #{tpu_custom_call.1} parent=55 // pred_fallthru
          _
      $region56: #{tpu_custom_call.1} parent=5 // pred_fallthru
        _
    $region6: #{tpu_custom_call.1} parent=1 // loop_footer
      %s22 = sadd.s32 1, %s18
    $region7: #{tpu_custom_call.1} parent=1 // loop_footer_branch
      %17 = sbr.rel target = $region3
    $region8: #{tpu_custom_call.1} parent=1 // loop_exit
      _
    %1448 = vsyncpa [#allocation4], 1
    %s1449 = scalar_lea.sflag [#allocation4], 1
    %1450 = vsyncpa %s1449, 1
    %1451 = vsyncpa [#allocation5], 1
    %s1452 = scalar_lea.sflag [#allocation5], 1
    %1453 = vsyncpa %s1452, 1

</llo_original>
